<compile_context>
chip_gen: v6e
topology: v6e:2x2x1
jax: 0.10.0
libtpu: 0.0.40
codegen_flags: <defaults>
</compile_context>

<pallas_src>
import functools
import math

import jax
import jax.numpy as jnp
import numpy as np
from jax.experimental import pallas as pl

B, S, H = 2, 8, 32      # batch, sequence, hidden
NH, DH = 4, 8           # heads, head dim (NH * DH == H)
F = 64                  # FFN intermediate size
V = 100                 # vocab size
L = 2                   # encoder layers
EPS = 1e-12             # BERT layernorm eps


def _layernorm(x, gamma, beta):
    mu = jnp.mean(x, axis=-1, keepdims=True)
    var = jnp.mean((x - mu) ** 2, axis=-1, keepdims=True)
    return (x - mu) * jax.lax.rsqrt(var + EPS) * gamma + beta


# ---------------------------------------------------------------------------
# Single fused kernel: embedding lookup + LN -> L encoder layers -> mean pool
# ---------------------------------------------------------------------------
def fused_encoder_kernel(ids_ref, keyneg_ref, headmask_ref, tok_ref, pos_ref,
                         embln_ref, wqkv_ref, bqkv_ref, wo_ref, w1_ref, b1_ref,
                         w2_ref, vecs_ref, o_ref, *, num_heads):
    # ids_ref:      (B*S, 1)  int32 token ids
    # keyneg_ref:   (1, NH*B*S) f32 additive key-padding mask (head-major order)
    # headmask_ref: (NH*B*S, NH*B*S) f32, 0 on same-(head,batch) blocks, -1e9 elsewhere
    # tok_ref:      (V, H) bf16   pos_ref: (S, H) f32   embln_ref: (2, H) f32
    # wqkv_ref: (L,H,3H) bf16  bqkv_ref: (L,1,3H) f32  (1/sqrt(DH) folded into q part)
    # wo_ref: (L,H,H) bf16  w1_ref: (L,H,F) bf16  b1_ref: (L,1,F) f32  w2_ref: (L,F,H) bf16
    # vecs_ref: (L,6,H) f32 rows = [bo, ln1_g, ln1_b, b2, ln2_g, ln2_b]
    # o_ref:    (B, H) f32 mean-pooled embeddings (only HBM write)
    f32, bf16 = jnp.float32, jnp.bfloat16
    BSf = ids_ref.shape[0]               # B*S
    Vv, Hh = tok_ref.shape
    Ss = pos_ref.shape[0]
    Bb = BSf // Ss
    Ll = wqkv_ref.shape[0]
    Dh = Hh // num_heads

    # ---- fused embedding lookup: one-hot(ids) @ tok_emb (gather as a tiny MXU op) --
    vocab_iota = jax.lax.broadcasted_iota(jnp.int32, (BSf, Vv), 1)
    onehot = (ids_ref[...] == vocab_iota).astype(bf16)                   # (B*S, V)
    emb = jnp.dot(onehot, tok_ref[...], preferred_element_type=f32)      # (B*S, H)
    pos_tiled = jnp.concatenate([pos_ref[...]] * Bb, axis=0)             # (B*S, H)
    x = _layernorm(emb + pos_tiled, embln_ref[0:1, :], embln_ref[1:2, :])

    # combined additive attention bias (same-(head,batch) block structure + padding),
    # computed once, shared by all layers
    attn_bias = headmask_ref[...] + keyneg_ref[...]                      # (NH*B*S,)^2

    # ---- encoder layers (static unroll; L = 2). For deep stacks, move L onto a
    #      pipelined "arbitrary" grid axis and stream weights instead. --------------
    for l in range(Ll):
        qkv = jnp.dot(x.astype(bf16), wqkv_ref[l],
                      preferred_element_type=f32) + bqkv_ref[l]          # (B*S, 3H)

        # head-major stacking (rows = (head, batch, seq)) via static lane slices and
        # sublane concats — no transposes / lane-splitting reshapes.
        def stack_heads(base):
            return jnp.concatenate(
                [qkv[:, base + h * Dh: base + (h + 1) * Dh]
                 for h in range(num_heads)], axis=0)                     # (NH*B*S, DH)

        q2 = stack_heads(0)           # scale already folded into wq/bq
        k2 = stack_heads(Hh)
        v2 = stack_heads(2 * Hh)

        # one block-diagonal score matmul covering every (batch, head) group
        s = jnp.einsum("qd,kd->qk", q2.astype(bf16), k2.astype(bf16),
                       preferred_element_type=f32)                       # (NH*B*S,)^2
        s = s + attn_bias
        s = s - jnp.max(s, axis=-1, keepdims=True)
        p = jnp.exp(s)
        p = p * pl.reciprocal(jnp.sum(p, axis=-1, keepdims=True), approx=True)
        ctx2 = jnp.dot(p.astype(bf16), v2.astype(bf16),
                       preferred_element_type=f32)                       # (NH*B*S, DH)
        ctx = jnp.concatenate(
            [ctx2[h * BSf:(h + 1) * BSf, :] for h in range(num_heads)],
            axis=1)                                                      # (B*S, H)

        vl = vecs_ref[l]              # (6, H) = [bo, g1, be1, b2, g2, be2]
        attn_out = jnp.dot(ctx.astype(bf16), wo_ref[l],
                           preferred_element_type=f32) + vl[0:1]
        h1 = _layernorm(x + attn_out, vl[1:2], vl[2:3])

        ff = jnp.dot(h1.astype(bf16), w1_ref[l],
                     preferred_element_type=f32) + b1_ref[l]
        ff = jax.nn.gelu(ff, approximate=True)
        ff = jnp.dot(ff.astype(bf16), w2_ref[l],
                     preferred_element_type=f32) + vl[3:4]
        x = _layernorm(h1 + ff, vl[4:5], vl[5:6])

    # mean pool over sequence (torch: last_hidden_state.mean(dim=1); includes padded
    # positions by design). Output is one full (B, H) block — at H=32 the store is
    # lane-masked regardless (cannot reach 128 lanes at this toy size).
    pooled = jnp.concatenate(
        [jnp.mean(x[b * Ss:(b + 1) * Ss, :], axis=0, keepdims=True) for b in range(Bb)],
        axis=0)                                                          # (B, H)
    o_ref[...] = pooled


# ---------------------------------------------------------------------------
# Wrapper: single un-gridded pallas_call (whole arrays resident in VMEM)
# ---------------------------------------------------------------------------
@jax.jit
def text_embedding_forward(kp, input_ids, attention_mask):
    Bb, Ss = input_ids.shape
    BS = Bb * Ss
    TA = NH * BS

    # data-dependent additive key-padding mask laid out in head-major column order
    key_neg = ((1.0 - attention_mask.astype(jnp.float32)) * -1e9).reshape(1, BS)
    key_neg = jnp.tile(key_neg, (1, NH))                                 # (1, TA)

    # trace-time constant: 0 on same-(head, batch) blocks, -1e9 elsewhere
    r = np.arange(TA)
    same = ((r[:, None] // BS) == (r[None, :] // BS)) & \
           (((r[:, None] % BS) // Ss) == ((r[None, :] % BS) // Ss))
    head_mask = jnp.asarray(np.where(same, 0.0, -1e9).astype(np.float32))

    ids = input_ids.reshape(BS, 1).astype(jnp.int32)

    out = pl.pallas_call(
        functools.partial(fused_encoder_kernel, num_heads=NH),
        out_shape=jax.ShapeDtypeStruct((Bb, H), jnp.float32),
    )(ids, key_neg, head_mask, kp["tok_emb"], kp["pos_emb"], kp["embln"],
      kp["wqkv"], kp["bqkv"], kp["wo"], kp["w1"], kp["b1"], kp["w2"], kp["vecs"])
    return out


# ---------------------------------------------------------------------------
# Parameters (deterministic synthetic init; no checkpoint load)
# ---------------------------------------------------------------------------
def init_params(key):
    def nrm(k, shape, scale=0.02):
        return (scale * jax.random.normal(k, shape)).astype(jnp.float32)

    ks = iter(jax.random.split(key, 32))
    return {
        "tok_emb": nrm(next(ks), (V, H)),
        "pos_emb": nrm(next(ks), (S, H)),
        "emb_g": 1.0 + nrm(next(ks), (H,)), "emb_b": nrm(next(ks), (H,)),
        "wq": nrm(next(ks), (L, H, H)), "bq": nrm(next(ks), (L, H)),
        "wk": nrm(next(ks), (L, H, H)), "bk": nrm(next(ks), (L, H)),
        "wv": nrm(next(ks), (L, H, H)), "bv": nrm(next(ks), (L, H)),
        "wo": nrm(next(ks), (L, H, H)), "bo": nrm(next(ks), (L, H)),
        "ln1_g": 1.0 + nrm(next(ks), (L, H)), "ln1_b": nrm(next(ks), (L, H)),
        "w1": nrm(next(ks), (L, H, F)), "b1": nrm(next(ks), (L, F)),
        "w2": nrm(next(ks), (L, F, H)), "b2": nrm(next(ks), (L, H)),
        "ln2_g": 1.0 + nrm(next(ks), (L, H)), "ln2_b": nrm(next(ks), (L, H)),
    }


def prepare_kernel_params(p):
    """Pack / fuse / cast master f32 params for the kernel (one-time constant fold)."""
    c = 1.0 / math.sqrt(DH)                      # attention scale folded into wq / bq
    wqkv = jnp.concatenate([p["wq"] * c, p["wk"], p["wv"]], axis=2)      # (L, H, 3H)
    bqkv = jnp.concatenate([p["bq"] * c, p["bk"], p["bv"]], axis=1)[:, None, :]
    vecs = jnp.stack([p["bo"], p["ln1_g"], p["ln1_b"],
                      p["b2"], p["ln2_g"], p["ln2_b"]], axis=1)          # (L, 6, H)
    return {
        "tok_emb": p["tok_emb"].astype(jnp.bfloat16),
        "pos_emb": p["pos_emb"].astype(jnp.float32),
        "embln": jnp.stack([p["emb_g"], p["emb_b"]], axis=0).astype(jnp.float32),
        "wqkv": wqkv.astype(jnp.bfloat16),
        "bqkv": bqkv.astype(jnp.float32),
        "wo": p["wo"].astype(jnp.bfloat16),
        "w1": p["w1"].astype(jnp.bfloat16),
        "b1": p["b1"][:, None, :].astype(jnp.float32),
        "w2": p["w2"].astype(jnp.bfloat16),
        "vecs": vecs.astype(jnp.float32),
    }


# ---------------------------------------------------------------------------
# Pure-JAX f32 reference (standard multi-head attention formulation)
# ---------------------------------------------------------------------------
def reference_forward(p, input_ids, attention_mask):
    Bb, Ss = input_ids.shape
    x = jnp.take(p["tok_emb"], input_ids, axis=0) + p["pos_emb"][None, :, :]
    x = _layernorm(x, p["emb_g"], p["emb_b"])
    neg = (1.0 - attention_mask.astype(jnp.float32)) * -1e9              # (B, S)
    for l in range(L):
        q = (x @ p["wq"][l] + p["bq"][l]).reshape(Bb, Ss, NH, DH)
        k = (x @ p["wk"][l] + p["bk"][l]).reshape(Bb, Ss, NH, DH)
        v = (x @ p["wv"][l] + p["bv"][l]).reshape(Bb, Ss, NH, DH)
        s = jnp.einsum("bqnd,bknd->bnqk", q, k) / math.sqrt(DH)
        s = s + neg[:, None, None, :]
        a = jax.nn.softmax(s, axis=-1)
        ctx = jnp.einsum("bnqk,bknd->bqnd", a, v).reshape(Bb, Ss, H)
        attn_out = ctx @ p["wo"][l] + p["bo"][l]
        h1 = _layernorm(x + attn_out, p["ln1_g"][l], p["ln1_b"][l])
        ff = jax.nn.gelu(h1 @ p["w1"][l] + p["b1"][l], approximate=True)
        ff = ff @ p["w2"][l] + p["b2"][l]
        x = _layernorm(h1 + ff, p["ln2_g"][l], p["ln2_b"][l])
    return x.mean(axis=1)


if __name__ == "__main__":
    key = jax.random.PRNGKey(0)
    pkey, ikey = jax.random.split(key)
    master = init_params(pkey)
    kparams = prepare_kernel_params(master)

    input_ids = jax.random.randint(ikey, (B, S), 0, V, dtype=jnp.int32)
    attention_mask = jnp.ones((B, S), jnp.int32).at[:, S - 2:].set(0)   # last 2 padded

    out = text_embedding_forward(kparams, input_ids, attention_mask)
    out = jax.block_until_ready(out)
    assert out.shape == (B, H), out.shape

    # NOTE: mean pooling averages over all S positions (matches
    # last_hidden_state.mean(dim=1) in the PyTorch spec, not masked-mean).
    ref = reference_forward(master, input_ids, attention_mask)
    assert np.allclose(np.asarray(out), np.asarray(ref), atol=2e-2, rtol=2e-2), \
        float(np.abs(np.asarray(out) - np.asarray(ref)).max())

    print("KERNEL_OK")
</pallas_src>

<mosaic_0001>
module attributes {stable_mosaic.version = 11 : i64} {
  func.func @fused_encoder_kernel(%arg0: memref<16x1xi32, #tpu.memory_space<vmem>>, %arg1: memref<1x64xf32, #tpu.memory_space<vmem>>, %arg2: memref<64x64xf32, #tpu.memory_space<vmem>>, %arg3: memref<100x32xbf16, #tpu.memory_space<vmem>>, %arg4: memref<8x32xf32, #tpu.memory_space<vmem>>, %arg5: memref<2x32xf32, #tpu.memory_space<vmem>>, %arg6: memref<2x32x96xbf16, #tpu.memory_space<vmem>>, %arg7: memref<2x1x96xf32, #tpu.memory_space<vmem>>, %arg8: memref<2x32x32xbf16, #tpu.memory_space<vmem>>, %arg9: memref<2x32x64xbf16, #tpu.memory_space<vmem>>, %arg10: memref<2x1x64xf32, #tpu.memory_space<vmem>>, %arg11: memref<2x64x32xbf16, #tpu.memory_space<vmem>>, %arg12: memref<2x6x32xf32, #tpu.memory_space<vmem>>, %arg13: memref<2x32xf32, #tpu.memory_space<vmem>>) attributes {dimension_semantics = [], scalar_prefetch = 0 : i64, scratch_operands = 0 : i64, tpu.core_type = #tpu.core_type<tc>} {
    %0 = tpu.iota {dimensions = array<i32: 1>} : vector<16x100xi32>
    %c0 = arith.constant 0 : index
    %c0_0 = arith.constant 0 : index
    %1 = vector.load %arg0[%c0, %c0_0] : memref<16x1xi32, #tpu.memory_space<vmem>>, vector<16x1xi32>
    %2 = vector.broadcast %1 : vector<16x1xi32> to vector<16x100xi32>
    %3 = arith.cmpi eq, %2, %0 : vector<16x100xi32>
    %4 = arith.extui %3 : vector<16x100xi1> to vector<16x100xi32>
    %5 = arith.sitofp %4 : vector<16x100xi32> to vector<16x100xf32>
    %6 = arith.truncf %5 : vector<16x100xf32> to vector<16x100xbf16>
    %c0_1 = arith.constant 0 : index
    %c0_2 = arith.constant 0 : index
    %7 = vector.load %arg3[%c0_1, %c0_2] : memref<100x32xbf16, #tpu.memory_space<vmem>>, vector<100x32xbf16>
    %cst = arith.constant dense<0.000000e+00> : vector<16x32xf32>
    %8 = tpu.matmul %6, %7, %cst {dimension_numbers = #tpu.dot_dimension_numbers<[1], [0], [0], [1], [0, 0, 1, 1], [], []>} : vector<16x100xbf16>, vector<100x32xbf16>, vector<16x32xf32> -> vector<16x32xf32>
    %c0_3 = arith.constant 0 : index
    %c0_4 = arith.constant 0 : index
    %9 = vector.load %arg4[%c0_3, %c0_4] : memref<8x32xf32, #tpu.memory_space<vmem>>, vector<8x32xf32>
    %10 = tpu.concatenate %9, %9 in 0 : vector<8x32xf32>, vector<8x32xf32> -> vector<16x32xf32>
    %11 = arith.addf %8, %10 : vector<16x32xf32>
    %c0_5 = arith.constant 0 : index
    %c0_6 = arith.constant 0 : index
    %12 = vector.load %arg5[%c0_5, %c0_6] : memref<2x32xf32, #tpu.memory_space<vmem>>, vector<1x32xf32>
    %c1 = arith.constant 1 : index
    %c0_7 = arith.constant 0 : index
    %13 = vector.load %arg5[%c1, %c0_7] : memref<2x32xf32, #tpu.memory_space<vmem>>, vector<1x32xf32>
    %cst_8 = arith.constant dense<0.000000e+00> : vector<16xf32>
    %14 = vector.multi_reduction <add>, %11, %cst_8 [1] : vector<16x32xf32> to vector<16xf32>
    %15 = vector.shape_cast %14 : vector<16xf32> to vector<16x1xf32>
    %cst_9 = arith.constant 3.200000e+01 : f32
    %16 = vector.broadcast %cst_9 : f32 to vector<16x1xf32>
    %17 = arith.divf %15, %16 : vector<16x1xf32>
    %18 = vector.broadcast %17 : vector<16x1xf32> to vector<16x32xf32>
    %19 = arith.subf %11, %18 : vector<16x32xf32>
    %20 = arith.mulf %19, %19 : vector<16x32xf32>
    %cst_10 = arith.constant dense<0.000000e+00> : vector<16xf32>
    %21 = vector.multi_reduction <add>, %20, %cst_10 [1] : vector<16x32xf32> to vector<16xf32>
    %22 = vector.shape_cast %21 : vector<16xf32> to vector<16x1xf32>
    %cst_11 = arith.constant 3.200000e+01 : f32
    %23 = vector.broadcast %cst_11 : f32 to vector<16x1xf32>
    %24 = arith.divf %22, %23 : vector<16x1xf32>
    %25 = vector.broadcast %17 : vector<16x1xf32> to vector<16x32xf32>
    %26 = arith.subf %11, %25 : vector<16x32xf32>
    %cst_12 = arith.constant 9.99999996E-13 : f32
    %27 = vector.broadcast %cst_12 : f32 to vector<16x1xf32>
    %28 = arith.addf %24, %27 : vector<16x1xf32>
    %29 = math.rsqrt %28 : vector<16x1xf32>
    %30 = vector.broadcast %29 : vector<16x1xf32> to vector<16x32xf32>
    %31 = arith.mulf %26, %30 : vector<16x32xf32>
    %32 = vector.broadcast %12 : vector<1x32xf32> to vector<16x32xf32>
    %33 = arith.mulf %31, %32 : vector<16x32xf32>
    %34 = vector.broadcast %13 : vector<1x32xf32> to vector<16x32xf32>
    %35 = arith.addf %33, %34 : vector<16x32xf32>
    %c0_13 = arith.constant 0 : index
    %c0_14 = arith.constant 0 : index
    %36 = vector.load %arg2[%c0_13, %c0_14] : memref<64x64xf32, #tpu.memory_space<vmem>>, vector<64x64xf32>
    %c0_15 = arith.constant 0 : index
    %c0_16 = arith.constant 0 : index
    %37 = vector.load %arg1[%c0_15, %c0_16] : memref<1x64xf32, #tpu.memory_space<vmem>>, vector<1x64xf32>
    %38 = vector.broadcast %37 : vector<1x64xf32> to vector<64x64xf32>
    %39 = arith.addf %36, %38 : vector<64x64xf32>
    %40 = arith.truncf %35 : vector<16x32xf32> to vector<16x32xbf16>
    %c0_17 = arith.constant 0 : index
    %c0_18 = arith.constant 0 : index
    %c0_19 = arith.constant 0 : index
    %41 = vector.load %arg6[%c0_17, %c0_18, %c0_19] : memref<2x32x96xbf16, #tpu.memory_space<vmem>>, vector<1x32x96xbf16>
    %42 = vector.shape_cast %41 : vector<1x32x96xbf16> to vector<32x96xbf16>
    %cst_20 = arith.constant dense<0.000000e+00> : vector<16x96xf32>
    %43 = tpu.matmul %40, %42, %cst_20 {dimension_numbers = #tpu.dot_dimension_numbers<[1], [0], [0], [1], [0, 0, 1, 1], [], []>} : vector<16x32xbf16>, vector<32x96xbf16>, vector<16x96xf32> -> vector<16x96xf32>
    %c0_21 = arith.constant 0 : index
    %c0_22 = arith.constant 0 : index
    %c0_23 = arith.constant 0 : index
    %44 = vector.load %arg7[%c0_21, %c0_22, %c0_23] : memref<2x1x96xf32, #tpu.memory_space<vmem>>, vector<1x1x96xf32>
    %45 = vector.shape_cast %44 : vector<1x1x96xf32> to vector<1x96xf32>
    %46 = vector.broadcast %45 : vector<1x96xf32> to vector<16x96xf32>
    %47 = arith.addf %43, %46 : vector<16x96xf32>
    %48 = vector.extract_strided_slice %47 {offsets = [0, 0], sizes = [16, 8], strides = [1, 1]} : vector<16x96xf32> to vector<16x8xf32>
    %49 = vector.extract_strided_slice %47 {offsets = [0, 8], sizes = [16, 8], strides = [1, 1]} : vector<16x96xf32> to vector<16x8xf32>
    %50 = vector.extract_strided_slice %47 {offsets = [0, 16], sizes = [16, 8], strides = [1, 1]} : vector<16x96xf32> to vector<16x8xf32>
    %51 = vector.extract_strided_slice %47 {offsets = [0, 24], sizes = [16, 8], strides = [1, 1]} : vector<16x96xf32> to vector<16x8xf32>
    %52 = tpu.concatenate %48, %49, %50, %51 in 0 : vector<16x8xf32>, vector<16x8xf32>, vector<16x8xf32>, vector<16x8xf32> -> vector<64x8xf32>
    %53 = vector.extract_strided_slice %47 {offsets = [0, 32], sizes = [16, 8], strides = [1, 1]} : vector<16x96xf32> to vector<16x8xf32>
    %54 = vector.extract_strided_slice %47 {offsets = [0, 40], sizes = [16, 8], strides = [1, 1]} : vector<16x96xf32> to vector<16x8xf32>
    %55 = vector.extract_strided_slice %47 {offsets = [0, 48], sizes = [16, 8], strides = [1, 1]} : vector<16x96xf32> to vector<16x8xf32>
    %56 = vector.extract_strided_slice %47 {offsets = [0, 56], sizes = [16, 8], strides = [1, 1]} : vector<16x96xf32> to vector<16x8xf32>
    %57 = tpu.concatenate %53, %54, %55, %56 in 0 : vector<16x8xf32>, vector<16x8xf32>, vector<16x8xf32>, vector<16x8xf32> -> vector<64x8xf32>
    %58 = vector.extract_strided_slice %47 {offsets = [0, 64], sizes = [16, 8], strides = [1, 1]} : vector<16x96xf32> to vector<16x8xf32>
    %59 = vector.extract_strided_slice %47 {offsets = [0, 72], sizes = [16, 8], strides = [1, 1]} : vector<16x96xf32> to vector<16x8xf32>
    %60 = vector.extract_strided_slice %47 {offsets = [0, 80], sizes = [16, 8], strides = [1, 1]} : vector<16x96xf32> to vector<16x8xf32>
    %61 = vector.extract_strided_slice %47 {offsets = [0, 88], sizes = [16, 8], strides = [1, 1]} : vector<16x96xf32> to vector<16x8xf32>
    %62 = tpu.concatenate %58, %59, %60, %61 in 0 : vector<16x8xf32>, vector<16x8xf32>, vector<16x8xf32>, vector<16x8xf32> -> vector<64x8xf32>
    %63 = arith.truncf %52 : vector<64x8xf32> to vector<64x8xbf16>
    %64 = arith.truncf %57 : vector<64x8xf32> to vector<64x8xbf16>
    "tpu.trace_start"() <{level = 10 : i32, message = "qd,kd->qk"}> : () -> ()
    %cst_24 = arith.constant dense<0.000000e+00> : vector<64x64xf32>
    %65 = tpu.matmul %63, %64, %cst_24 {dimension_numbers = #tpu.dot_dimension_numbers<[1], [1], [0], [0], [0, 0, 1, 0], [], []>} : vector<64x8xbf16>, vector<64x8xbf16>, vector<64x64xf32> -> vector<64x64xf32>
    "tpu.trace_stop"() : () -> ()
    %66 = arith.addf %65, %39 : vector<64x64xf32>
    %cst_25 = arith.constant dense<0xFF800000> : vector<64xf32>
    %67 = vector.multi_reduction <maximumf>, %66, %cst_25 [1] : vector<64x64xf32> to vector<64xf32>
    %68 = vector.shape_cast %67 : vector<64xf32> to vector<64x1xf32>
    %69 = vector.broadcast %68 : vector<64x1xf32> to vector<64x64xf32>
    %70 = arith.subf %66, %69 : vector<64x64xf32>
    %71 = math.exp %70 : vector<64x64xf32>
    %cst_26 = arith.constant dense<0.000000e+00> : vector<64xf32>
    %72 = vector.multi_reduction <add>, %71, %cst_26 [1] : vector<64x64xf32> to vector<64xf32>
    %73 = vector.shape_cast %72 : vector<64xf32> to vector<64x1xf32>
    %74 = tpu.reciprocal %73 {approx = true} : vector<64x1xf32> -> vector<64x1xf32>
    %75 = vector.broadcast %74 : vector<64x1xf32> to vector<64x64xf32>
    %76 = arith.mulf %71, %75 : vector<64x64xf32>
    %77 = arith.truncf %76 : vector<64x64xf32> to vector<64x64xbf16>
    %78 = arith.truncf %62 : vector<64x8xf32> to vector<64x8xbf16>
    %cst_27 = arith.constant dense<0.000000e+00> : vector<64x8xf32>
    %79 = tpu.matmul %77, %78, %cst_27 {dimension_numbers = #tpu.dot_dimension_numbers<[1], [0], [0], [1], [0, 0, 1, 1], [], []>} : vector<64x64xbf16>, vector<64x8xbf16>, vector<64x8xf32> -> vector<64x8xf32>
    %80 = vector.extract_strided_slice %79 {offsets = [0, 0], sizes = [16, 8], strides = [1, 1]} : vector<64x8xf32> to vector<16x8xf32>
    %81 = vector.extract_strided_slice %79 {offsets = [16, 0], sizes = [16, 8], strides = [1, 1]} : vector<64x8xf32> to vector<16x8xf32>
    %82 = vector.extract_strided_slice %79 {offsets = [32, 0], sizes = [16, 8], strides = [1, 1]} : vector<64x8xf32> to vector<16x8xf32>
    %83 = vector.extract_strided_slice %79 {offsets = [48, 0], sizes = [16, 8], strides = [1, 1]} : vector<64x8xf32> to vector<16x8xf32>
    %84 = tpu.concatenate %80, %81, %82, %83 in 1 : vector<16x8xf32>, vector<16x8xf32>, vector<16x8xf32>, vector<16x8xf32> -> vector<16x32xf32>
    %c0_28 = arith.constant 0 : index
    %c0_29 = arith.constant 0 : index
    %c0_30 = arith.constant 0 : index
    %85 = vector.load %arg12[%c0_28, %c0_29, %c0_30] : memref<2x6x32xf32, #tpu.memory_space<vmem>>, vector<1x6x32xf32>
    %86 = vector.shape_cast %85 : vector<1x6x32xf32> to vector<6x32xf32>
    %87 = arith.truncf %84 : vector<16x32xf32> to vector<16x32xbf16>
    %c0_31 = arith.constant 0 : index
    %c0_32 = arith.constant 0 : index
    %c0_33 = arith.constant 0 : index
    %88 = vector.load %arg8[%c0_31, %c0_32, %c0_33] : memref<2x32x32xbf16, #tpu.memory_space<vmem>>, vector<1x32x32xbf16>
    %89 = vector.shape_cast %88 : vector<1x32x32xbf16> to vector<32x32xbf16>
    %cst_34 = arith.constant dense<0.000000e+00> : vector<16x32xf32>
    %90 = tpu.matmul %87, %89, %cst_34 {dimension_numbers = #tpu.dot_dimension_numbers<[1], [0], [0], [1], [0, 0, 1, 1], [], []>} : vector<16x32xbf16>, vector<32x32xbf16>, vector<16x32xf32> -> vector<16x32xf32>
    %91 = vector.extract_strided_slice %86 {offsets = [0, 0], sizes = [1, 32], strides = [1, 1]} : vector<6x32xf32> to vector<1x32xf32>
    %92 = vector.broadcast %91 : vector<1x32xf32> to vector<16x32xf32>
    %93 = arith.addf %90, %92 : vector<16x32xf32>
    %94 = arith.addf %35, %93 : vector<16x32xf32>
    %95 = vector.extract_strided_slice %86 {offsets = [1, 0], sizes = [1, 32], strides = [1, 1]} : vector<6x32xf32> to vector<1x32xf32>
    %96 = vector.extract_strided_slice %86 {offsets = [2, 0], sizes = [1, 32], strides = [1, 1]} : vector<6x32xf32> to vector<1x32xf32>
    %cst_35 = arith.constant dense<0.000000e+00> : vector<16xf32>
    %97 = vector.multi_reduction <add>, %94, %cst_35 [1] : vector<16x32xf32> to vector<16xf32>
    %98 = vector.shape_cast %97 : vector<16xf32> to vector<16x1xf32>
    %cst_36 = arith.constant 3.200000e+01 : f32
    %99 = vector.broadcast %cst_36 : f32 to vector<16x1xf32>
    %100 = arith.divf %98, %99 : vector<16x1xf32>
    %101 = vector.broadcast %100 : vector<16x1xf32> to vector<16x32xf32>
    %102 = arith.subf %94, %101 : vector<16x32xf32>
    %103 = arith.mulf %102, %102 : vector<16x32xf32>
    %cst_37 = arith.constant dense<0.000000e+00> : vector<16xf32>
    %104 = vector.multi_reduction <add>, %103, %cst_37 [1] : vector<16x32xf32> to vector<16xf32>
    %105 = vector.shape_cast %104 : vector<16xf32> to vector<16x1xf32>
    %cst_38 = arith.constant 3.200000e+01 : f32
    %106 = vector.broadcast %cst_38 : f32 to vector<16x1xf32>
    %107 = arith.divf %105, %106 : vector<16x1xf32>
    %108 = vector.broadcast %100 : vector<16x1xf32> to vector<16x32xf32>
    %109 = arith.subf %94, %108 : vector<16x32xf32>
    %cst_39 = arith.constant 9.99999996E-13 : f32
    %110 = vector.broadcast %cst_39 : f32 to vector<16x1xf32>
    %111 = arith.addf %107, %110 : vector<16x1xf32>
    %112 = math.rsqrt %111 : vector<16x1xf32>
    %113 = vector.broadcast %112 : vector<16x1xf32> to vector<16x32xf32>
    %114 = arith.mulf %109, %113 : vector<16x32xf32>
    %115 = vector.broadcast %95 : vector<1x32xf32> to vector<16x32xf32>
    %116 = arith.mulf %114, %115 : vector<16x32xf32>
    %117 = vector.broadcast %96 : vector<1x32xf32> to vector<16x32xf32>
    %118 = arith.addf %116, %117 : vector<16x32xf32>
    %119 = arith.truncf %118 : vector<16x32xf32> to vector<16x32xbf16>
    %c0_40 = arith.constant 0 : index
    %c0_41 = arith.constant 0 : index
    %c0_42 = arith.constant 0 : index
    %120 = vector.load %arg9[%c0_40, %c0_41, %c0_42] : memref<2x32x64xbf16, #tpu.memory_space<vmem>>, vector<1x32x64xbf16>
    %121 = vector.shape_cast %120 : vector<1x32x64xbf16> to vector<32x64xbf16>
    %cst_43 = arith.constant dense<0.000000e+00> : vector<16x64xf32>
    %122 = tpu.matmul %119, %121, %cst_43 {dimension_numbers = #tpu.dot_dimension_numbers<[1], [0], [0], [1], [0, 0, 1, 1], [], []>} : vector<16x32xbf16>, vector<32x64xbf16>, vector<16x64xf32> -> vector<16x64xf32>
    %c0_44 = arith.constant 0 : index
    %c0_45 = arith.constant 0 : index
    %c0_46 = arith.constant 0 : index
    %123 = vector.load %arg10[%c0_44, %c0_45, %c0_46] : memref<2x1x64xf32, #tpu.memory_space<vmem>>, vector<1x1x64xf32>
    %124 = vector.shape_cast %123 : vector<1x1x64xf32> to vector<1x64xf32>
    %125 = vector.broadcast %124 : vector<1x64xf32> to vector<16x64xf32>
    %126 = arith.addf %122, %125 : vector<16x64xf32>
    %127 = arith.mulf %126, %126 : vector<16x64xf32>
    %128 = arith.mulf %126, %127 : vector<16x64xf32>
    %cst_47 = arith.constant 4.471500e-02 : f32
    %129 = vector.broadcast %cst_47 : f32 to vector<16x64xf32>
    %130 = arith.mulf %129, %128 : vector<16x64xf32>
    %131 = arith.addf %126, %130 : vector<16x64xf32>
    %cst_48 = arith.constant 0.797884583 : f32
    %132 = vector.broadcast %cst_48 : f32 to vector<16x64xf32>
    %133 = arith.mulf %132, %131 : vector<16x64xf32>
    %134 = math.tanh %133 : vector<16x64xf32>
    %cst_49 = arith.constant 1.000000e+00 : f32
    %135 = vector.broadcast %cst_49 : f32 to vector<16x64xf32>
    %136 = arith.addf %135, %134 : vector<16x64xf32>
    %cst_50 = arith.constant 5.000000e-01 : f32
    %137 = vector.broadcast %cst_50 : f32 to vector<16x64xf32>
    %138 = arith.mulf %137, %136 : vector<16x64xf32>
    %139 = arith.mulf %126, %138 : vector<16x64xf32>
    %140 = arith.truncf %139 : vector<16x64xf32> to vector<16x64xbf16>
    %c0_51 = arith.constant 0 : index
    %c0_52 = arith.constant 0 : index
    %c0_53 = arith.constant 0 : index
    %141 = vector.load %arg11[%c0_51, %c0_52, %c0_53] : memref<2x64x32xbf16, #tpu.memory_space<vmem>>, vector<1x64x32xbf16>
    %142 = vector.shape_cast %141 : vector<1x64x32xbf16> to vector<64x32xbf16>
    %cst_54 = arith.constant dense<0.000000e+00> : vector<16x32xf32>
    %143 = tpu.matmul %140, %142, %cst_54 {dimension_numbers = #tpu.dot_dimension_numbers<[1], [0], [0], [1], [0, 0, 1, 1], [], []>} : vector<16x64xbf16>, vector<64x32xbf16>, vector<16x32xf32> -> vector<16x32xf32>
    %144 = vector.extract_strided_slice %86 {offsets = [3, 0], sizes = [1, 32], strides = [1, 1]} : vector<6x32xf32> to vector<1x32xf32>
    %145 = vector.broadcast %144 : vector<1x32xf32> to vector<16x32xf32>
    %146 = arith.addf %143, %145 : vector<16x32xf32>
    %147 = arith.addf %118, %146 : vector<16x32xf32>
    %148 = vector.extract_strided_slice %86 {offsets = [4, 0], sizes = [1, 32], strides = [1, 1]} : vector<6x32xf32> to vector<1x32xf32>
    %149 = vector.extract_strided_slice %86 {offsets = [5, 0], sizes = [1, 32], strides = [1, 1]} : vector<6x32xf32> to vector<1x32xf32>
    %cst_55 = arith.constant dense<0.000000e+00> : vector<16xf32>
    %150 = vector.multi_reduction <add>, %147, %cst_55 [1] : vector<16x32xf32> to vector<16xf32>
    %151 = vector.shape_cast %150 : vector<16xf32> to vector<16x1xf32>
    %cst_56 = arith.constant 3.200000e+01 : f32
    %152 = vector.broadcast %cst_56 : f32 to vector<16x1xf32>
    %153 = arith.divf %151, %152 : vector<16x1xf32>
    %154 = vector.broadcast %153 : vector<16x1xf32> to vector<16x32xf32>
    %155 = arith.subf %147, %154 : vector<16x32xf32>
    %156 = arith.mulf %155, %155 : vector<16x32xf32>
    %cst_57 = arith.constant dense<0.000000e+00> : vector<16xf32>
    %157 = vector.multi_reduction <add>, %156, %cst_57 [1] : vector<16x32xf32> to vector<16xf32>
    %158 = vector.shape_cast %157 : vector<16xf32> to vector<16x1xf32>
    %cst_58 = arith.constant 3.200000e+01 : f32
    %159 = vector.broadcast %cst_58 : f32 to vector<16x1xf32>
    %160 = arith.divf %158, %159 : vector<16x1xf32>
    %161 = vector.broadcast %153 : vector<16x1xf32> to vector<16x32xf32>
    %162 = arith.subf %147, %161 : vector<16x32xf32>
    %cst_59 = arith.constant 9.99999996E-13 : f32
    %163 = vector.broadcast %cst_59 : f32 to vector<16x1xf32>
    %164 = arith.addf %160, %163 : vector<16x1xf32>
    %165 = math.rsqrt %164 : vector<16x1xf32>
    %166 = vector.broadcast %165 : vector<16x1xf32> to vector<16x32xf32>
    %167 = arith.mulf %162, %166 : vector<16x32xf32>
    %168 = vector.broadcast %148 : vector<1x32xf32> to vector<16x32xf32>
    %169 = arith.mulf %167, %168 : vector<16x32xf32>
    %170 = vector.broadcast %149 : vector<1x32xf32> to vector<16x32xf32>
    %171 = arith.addf %169, %170 : vector<16x32xf32>
    %172 = arith.truncf %171 : vector<16x32xf32> to vector<16x32xbf16>
    %c1_60 = arith.constant 1 : index
    %c0_61 = arith.constant 0 : index
    %c0_62 = arith.constant 0 : index
    %173 = vector.load %arg6[%c1_60, %c0_61, %c0_62] : memref<2x32x96xbf16, #tpu.memory_space<vmem>>, vector<1x32x96xbf16>
    %174 = vector.shape_cast %173 : vector<1x32x96xbf16> to vector<32x96xbf16>
    %cst_63 = arith.constant dense<0.000000e+00> : vector<16x96xf32>
    %175 = tpu.matmul %172, %174, %cst_63 {dimension_numbers = #tpu.dot_dimension_numbers<[1], [0], [0], [1], [0, 0, 1, 1], [], []>} : vector<16x32xbf16>, vector<32x96xbf16>, vector<16x96xf32> -> vector<16x96xf32>
    %c1_64 = arith.constant 1 : index
    %c0_65 = arith.constant 0 : index
    %c0_66 = arith.constant 0 : index
    %176 = vector.load %arg7[%c1_64, %c0_65, %c0_66] : memref<2x1x96xf32, #tpu.memory_space<vmem>>, vector<1x1x96xf32>
    %177 = vector.shape_cast %176 : vector<1x1x96xf32> to vector<1x96xf32>
    %178 = vector.broadcast %177 : vector<1x96xf32> to vector<16x96xf32>
    %179 = arith.addf %175, %178 : vector<16x96xf32>
    %180 = vector.extract_strided_slice %179 {offsets = [0, 0], sizes = [16, 8], strides = [1, 1]} : vector<16x96xf32> to vector<16x8xf32>
    %181 = vector.extract_strided_slice %179 {offsets = [0, 8], sizes = [16, 8], strides = [1, 1]} : vector<16x96xf32> to vector<16x8xf32>
    %182 = vector.extract_strided_slice %179 {offsets = [0, 16], sizes = [16, 8], strides = [1, 1]} : vector<16x96xf32> to vector<16x8xf32>
    %183 = vector.extract_strided_slice %179 {offsets = [0, 24], sizes = [16, 8], strides = [1, 1]} : vector<16x96xf32> to vector<16x8xf32>
    %184 = tpu.concatenate %180, %181, %182, %183 in 0 : vector<16x8xf32>, vector<16x8xf32>, vector<16x8xf32>, vector<16x8xf32> -> vector<64x8xf32>
    %185 = vector.extract_strided_slice %179 {offsets = [0, 32], sizes = [16, 8], strides = [1, 1]} : vector<16x96xf32> to vector<16x8xf32>
    %186 = vector.extract_strided_slice %179 {offsets = [0, 40], sizes = [16, 8], strides = [1, 1]} : vector<16x96xf32> to vector<16x8xf32>
    %187 = vector.extract_strided_slice %179 {offsets = [0, 48], sizes = [16, 8], strides = [1, 1]} : vector<16x96xf32> to vector<16x8xf32>
    %188 = vector.extract_strided_slice %179 {offsets = [0, 56], sizes = [16, 8], strides = [1, 1]} : vector<16x96xf32> to vector<16x8xf32>
    %189 = tpu.concatenate %185, %186, %187, %188 in 0 : vector<16x8xf32>, vector<16x8xf32>, vector<16x8xf32>, vector<16x8xf32> -> vector<64x8xf32>
    %190 = vector.extract_strided_slice %179 {offsets = [0, 64], sizes = [16, 8], strides = [1, 1]} : vector<16x96xf32> to vector<16x8xf32>
    %191 = vector.extract_strided_slice %179 {offsets = [0, 72], sizes = [16, 8], strides = [1, 1]} : vector<16x96xf32> to vector<16x8xf32>
    %192 = vector.extract_strided_slice %179 {offsets = [0, 80], sizes = [16, 8], strides = [1, 1]} : vector<16x96xf32> to vector<16x8xf32>
    %193 = vector.extract_strided_slice %179 {offsets = [0, 88], sizes = [16, 8], strides = [1, 1]} : vector<16x96xf32> to vector<16x8xf32>
    %194 = tpu.concatenate %190, %191, %192, %193 in 0 : vector<16x8xf32>, vector<16x8xf32>, vector<16x8xf32>, vector<16x8xf32> -> vector<64x8xf32>
    %195 = arith.truncf %184 : vector<64x8xf32> to vector<64x8xbf16>
    %196 = arith.truncf %189 : vector<64x8xf32> to vector<64x8xbf16>
    "tpu.trace_start"() <{level = 10 : i32, message = "qd,kd->qk"}> : () -> ()
    %cst_67 = arith.constant dense<0.000000e+00> : vector<64x64xf32>
    %197 = tpu.matmul %195, %196, %cst_67 {dimension_numbers = #tpu.dot_dimension_numbers<[1], [1], [0], [0], [0, 0, 1, 0], [], []>} : vector<64x8xbf16>, vector<64x8xbf16>, vector<64x64xf32> -> vector<64x64xf32>
    "tpu.trace_stop"() : () -> ()
    %198 = arith.addf %197, %39 : vector<64x64xf32>
    %cst_68 = arith.constant dense<0xFF800000> : vector<64xf32>
    %199 = vector.multi_reduction <maximumf>, %198, %cst_68 [1] : vector<64x64xf32> to vector<64xf32>
    %200 = vector.shape_cast %199 : vector<64xf32> to vector<64x1xf32>
    %201 = vector.broadcast %200 : vector<64x1xf32> to vector<64x64xf32>
    %202 = arith.subf %198, %201 : vector<64x64xf32>
    %203 = math.exp %202 : vector<64x64xf32>
    %cst_69 = arith.constant dense<0.000000e+00> : vector<64xf32>
    %204 = vector.multi_reduction <add>, %203, %cst_69 [1] : vector<64x64xf32> to vector<64xf32>
    %205 = vector.shape_cast %204 : vector<64xf32> to vector<64x1xf32>
    %206 = tpu.reciprocal %205 {approx = true} : vector<64x1xf32> -> vector<64x1xf32>
    %207 = vector.broadcast %206 : vector<64x1xf32> to vector<64x64xf32>
    %208 = arith.mulf %203, %207 : vector<64x64xf32>
    %209 = arith.truncf %208 : vector<64x64xf32> to vector<64x64xbf16>
    %210 = arith.truncf %194 : vector<64x8xf32> to vector<64x8xbf16>
    %cst_70 = arith.constant dense<0.000000e+00> : vector<64x8xf32>
    %211 = tpu.matmul %209, %210, %cst_70 {dimension_numbers = #tpu.dot_dimension_numbers<[1], [0], [0], [1], [0, 0, 1, 1], [], []>} : vector<64x64xbf16>, vector<64x8xbf16>, vector<64x8xf32> -> vector<64x8xf32>
    %212 = vector.extract_strided_slice %211 {offsets = [0, 0], sizes = [16, 8], strides = [1, 1]} : vector<64x8xf32> to vector<16x8xf32>
    %213 = vector.extract_strided_slice %211 {offsets = [16, 0], sizes = [16, 8], strides = [1, 1]} : vector<64x8xf32> to vector<16x8xf32>
    %214 = vector.extract_strided_slice %211 {offsets = [32, 0], sizes = [16, 8], strides = [1, 1]} : vector<64x8xf32> to vector<16x8xf32>
    %215 = vector.extract_strided_slice %211 {offsets = [48, 0], sizes = [16, 8], strides = [1, 1]} : vector<64x8xf32> to vector<16x8xf32>
    %216 = tpu.concatenate %212, %213, %214, %215 in 1 : vector<16x8xf32>, vector<16x8xf32>, vector<16x8xf32>, vector<16x8xf32> -> vector<16x32xf32>
    %c1_71 = arith.constant 1 : index
    %c0_72 = arith.constant 0 : index
    %c0_73 = arith.constant 0 : index
    %217 = vector.load %arg12[%c1_71, %c0_72, %c0_73] : memref<2x6x32xf32, #tpu.memory_space<vmem>>, vector<1x6x32xf32>
    %218 = vector.shape_cast %217 : vector<1x6x32xf32> to vector<6x32xf32>
    %219 = arith.truncf %216 : vector<16x32xf32> to vector<16x32xbf16>
    %c1_74 = arith.constant 1 : index
    %c0_75 = arith.constant 0 : index
    %c0_76 = arith.constant 0 : index
    %220 = vector.load %arg8[%c1_74, %c0_75, %c0_76] : memref<2x32x32xbf16, #tpu.memory_space<vmem>>, vector<1x32x32xbf16>
    %221 = vector.shape_cast %220 : vector<1x32x32xbf16> to vector<32x32xbf16>
    %cst_77 = arith.constant dense<0.000000e+00> : vector<16x32xf32>
    %222 = tpu.matmul %219, %221, %cst_77 {dimension_numbers = #tpu.dot_dimension_numbers<[1], [0], [0], [1], [0, 0, 1, 1], [], []>} : vector<16x32xbf16>, vector<32x32xbf16>, vector<16x32xf32> -> vector<16x32xf32>
    %223 = vector.extract_strided_slice %218 {offsets = [0, 0], sizes = [1, 32], strides = [1, 1]} : vector<6x32xf32> to vector<1x32xf32>
    %224 = vector.broadcast %223 : vector<1x32xf32> to vector<16x32xf32>
    %225 = arith.addf %222, %224 : vector<16x32xf32>
    %226 = arith.addf %171, %225 : vector<16x32xf32>
    %227 = vector.extract_strided_slice %218 {offsets = [1, 0], sizes = [1, 32], strides = [1, 1]} : vector<6x32xf32> to vector<1x32xf32>
    %228 = vector.extract_strided_slice %218 {offsets = [2, 0], sizes = [1, 32], strides = [1, 1]} : vector<6x32xf32> to vector<1x32xf32>
    %cst_78 = arith.constant dense<0.000000e+00> : vector<16xf32>
    %229 = vector.multi_reduction <add>, %226, %cst_78 [1] : vector<16x32xf32> to vector<16xf32>
    %230 = vector.shape_cast %229 : vector<16xf32> to vector<16x1xf32>
    %cst_79 = arith.constant 3.200000e+01 : f32
    %231 = vector.broadcast %cst_79 : f32 to vector<16x1xf32>
    %232 = arith.divf %230, %231 : vector<16x1xf32>
    %233 = vector.broadcast %232 : vector<16x1xf32> to vector<16x32xf32>
    %234 = arith.subf %226, %233 : vector<16x32xf32>
    %235 = arith.mulf %234, %234 : vector<16x32xf32>
    %cst_80 = arith.constant dense<0.000000e+00> : vector<16xf32>
    %236 = vector.multi_reduction <add>, %235, %cst_80 [1] : vector<16x32xf32> to vector<16xf32>
    %237 = vector.shape_cast %236 : vector<16xf32> to vector<16x1xf32>
    %cst_81 = arith.constant 3.200000e+01 : f32
    %238 = vector.broadcast %cst_81 : f32 to vector<16x1xf32>
    %239 = arith.divf %237, %238 : vector<16x1xf32>
    %240 = vector.broadcast %232 : vector<16x1xf32> to vector<16x32xf32>
    %241 = arith.subf %226, %240 : vector<16x32xf32>
    %cst_82 = arith.constant 9.99999996E-13 : f32
    %242 = vector.broadcast %cst_82 : f32 to vector<16x1xf32>
    %243 = arith.addf %239, %242 : vector<16x1xf32>
    %244 = math.rsqrt %243 : vector<16x1xf32>
    %245 = vector.broadcast %244 : vector<16x1xf32> to vector<16x32xf32>
    %246 = arith.mulf %241, %245 : vector<16x32xf32>
    %247 = vector.broadcast %227 : vector<1x32xf32> to vector<16x32xf32>
    %248 = arith.mulf %246, %247 : vector<16x32xf32>
    %249 = vector.broadcast %228 : vector<1x32xf32> to vector<16x32xf32>
    %250 = arith.addf %248, %249 : vector<16x32xf32>
    %251 = arith.truncf %250 : vector<16x32xf32> to vector<16x32xbf16>
    %c1_83 = arith.constant 1 : index
    %c0_84 = arith.constant 0 : index
    %c0_85 = arith.constant 0 : index
    %252 = vector.load %arg9[%c1_83, %c0_84, %c0_85] : memref<2x32x64xbf16, #tpu.memory_space<vmem>>, vector<1x32x64xbf16>
    %253 = vector.shape_cast %252 : vector<1x32x64xbf16> to vector<32x64xbf16>
    %cst_86 = arith.constant dense<0.000000e+00> : vector<16x64xf32>
    %254 = tpu.matmul %251, %253, %cst_86 {dimension_numbers = #tpu.dot_dimension_numbers<[1], [0], [0], [1], [0, 0, 1, 1], [], []>} : vector<16x32xbf16>, vector<32x64xbf16>, vector<16x64xf32> -> vector<16x64xf32>
    %c1_87 = arith.constant 1 : index
    %c0_88 = arith.constant 0 : index
    %c0_89 = arith.constant 0 : index
    %255 = vector.load %arg10[%c1_87, %c0_88, %c0_89] : memref<2x1x64xf32, #tpu.memory_space<vmem>>, vector<1x1x64xf32>
    %256 = vector.shape_cast %255 : vector<1x1x64xf32> to vector<1x64xf32>
    %257 = vector.broadcast %256 : vector<1x64xf32> to vector<16x64xf32>
    %258 = arith.addf %254, %257 : vector<16x64xf32>
    %259 = arith.mulf %258, %258 : vector<16x64xf32>
    %260 = arith.mulf %258, %259 : vector<16x64xf32>
    %cst_90 = arith.constant 4.471500e-02 : f32
    %261 = vector.broadcast %cst_90 : f32 to vector<16x64xf32>
    %262 = arith.mulf %261, %260 : vector<16x64xf32>
    %263 = arith.addf %258, %262 : vector<16x64xf32>
    %cst_91 = arith.constant 0.797884583 : f32
    %264 = vector.broadcast %cst_91 : f32 to vector<16x64xf32>
    %265 = arith.mulf %264, %263 : vector<16x64xf32>
    %266 = math.tanh %265 : vector<16x64xf32>
    %cst_92 = arith.constant 1.000000e+00 : f32
    %267 = vector.broadcast %cst_92 : f32 to vector<16x64xf32>
    %268 = arith.addf %267, %266 : vector<16x64xf32>
    %cst_93 = arith.constant 5.000000e-01 : f32
    %269 = vector.broadcast %cst_93 : f32 to vector<16x64xf32>
    %270 = arith.mulf %269, %268 : vector<16x64xf32>
    %271 = arith.mulf %258, %270 : vector<16x64xf32>
    %272 = arith.truncf %271 : vector<16x64xf32> to vector<16x64xbf16>
    %c1_94 = arith.constant 1 : index
    %c0_95 = arith.constant 0 : index
    %c0_96 = arith.constant 0 : index
    %273 = vector.load %arg11[%c1_94, %c0_95, %c0_96] : memref<2x64x32xbf16, #tpu.memory_space<vmem>>, vector<1x64x32xbf16>
    %274 = vector.shape_cast %273 : vector<1x64x32xbf16> to vector<64x32xbf16>
    %cst_97 = arith.constant dense<0.000000e+00> : vector<16x32xf32>
    %275 = tpu.matmul %272, %274, %cst_97 {dimension_numbers = #tpu.dot_dimension_numbers<[1], [0], [0], [1], [0, 0, 1, 1], [], []>} : vector<16x64xbf16>, vector<64x32xbf16>, vector<16x32xf32> -> vector<16x32xf32>
    %276 = vector.extract_strided_slice %218 {offsets = [3, 0], sizes = [1, 32], strides = [1, 1]} : vector<6x32xf32> to vector<1x32xf32>
    %277 = vector.broadcast %276 : vector<1x32xf32> to vector<16x32xf32>
    %278 = arith.addf %275, %277 : vector<16x32xf32>
    %279 = arith.addf %250, %278 : vector<16x32xf32>
    %280 = vector.extract_strided_slice %218 {offsets = [4, 0], sizes = [1, 32], strides = [1, 1]} : vector<6x32xf32> to vector<1x32xf32>
    %281 = vector.extract_strided_slice %218 {offsets = [5, 0], sizes = [1, 32], strides = [1, 1]} : vector<6x32xf32> to vector<1x32xf32>
    %cst_98 = arith.constant dense<0.000000e+00> : vector<16xf32>
    %282 = vector.multi_reduction <add>, %279, %cst_98 [1] : vector<16x32xf32> to vector<16xf32>
    %283 = vector.shape_cast %282 : vector<16xf32> to vector<16x1xf32>
    %cst_99 = arith.constant 3.200000e+01 : f32
    %284 = vector.broadcast %cst_99 : f32 to vector<16x1xf32>
    %285 = arith.divf %283, %284 : vector<16x1xf32>
    %286 = vector.broadcast %285 : vector<16x1xf32> to vector<16x32xf32>
    %287 = arith.subf %279, %286 : vector<16x32xf32>
    %288 = arith.mulf %287, %287 : vector<16x32xf32>
    %cst_100 = arith.constant dense<0.000000e+00> : vector<16xf32>
    %289 = vector.multi_reduction <add>, %288, %cst_100 [1] : vector<16x32xf32> to vector<16xf32>
    %290 = vector.shape_cast %289 : vector<16xf32> to vector<16x1xf32>
    %cst_101 = arith.constant 3.200000e+01 : f32
    %291 = vector.broadcast %cst_101 : f32 to vector<16x1xf32>
    %292 = arith.divf %290, %291 : vector<16x1xf32>
    %293 = vector.broadcast %285 : vector<16x1xf32> to vector<16x32xf32>
    %294 = arith.subf %279, %293 : vector<16x32xf32>
    %cst_102 = arith.constant 9.99999996E-13 : f32
    %295 = vector.broadcast %cst_102 : f32 to vector<16x1xf32>
    %296 = arith.addf %292, %295 : vector<16x1xf32>
    %297 = math.rsqrt %296 : vector<16x1xf32>
    %298 = vector.broadcast %297 : vector<16x1xf32> to vector<16x32xf32>
    %299 = arith.mulf %294, %298 : vector<16x32xf32>
    %300 = vector.broadcast %280 : vector<1x32xf32> to vector<16x32xf32>
    %301 = arith.mulf %299, %300 : vector<16x32xf32>
    %302 = vector.broadcast %281 : vector<1x32xf32> to vector<16x32xf32>
    %303 = arith.addf %301, %302 : vector<16x32xf32>
    %304 = vector.extract_strided_slice %303 {offsets = [0, 0], sizes = [8, 32], strides = [1, 1]} : vector<16x32xf32> to vector<8x32xf32>
    %cst_103 = arith.constant dense<0.000000e+00> : vector<32xf32>
    %305 = vector.multi_reduction <add>, %304, %cst_103 [0] : vector<8x32xf32> to vector<32xf32>
    %306 = vector.shape_cast %305 : vector<32xf32> to vector<1x32xf32>
    %cst_104 = arith.constant 8.000000e+00 : f32
    %307 = vector.broadcast %cst_104 : f32 to vector<1x32xf32>
    %308 = arith.divf %306, %307 : vector<1x32xf32>
    %309 = vector.extract_strided_slice %303 {offsets = [8, 0], sizes = [8, 32], strides = [1, 1]} : vector<16x32xf32> to vector<8x32xf32>
    %cst_105 = arith.constant dense<0.000000e+00> : vector<32xf32>
    %310 = vector.multi_reduction <add>, %309, %cst_105 [0] : vector<8x32xf32> to vector<32xf32>
    %311 = vector.shape_cast %310 : vector<32xf32> to vector<1x32xf32>
    %cst_106 = arith.constant 8.000000e+00 : f32
    %312 = vector.broadcast %cst_106 : f32 to vector<1x32xf32>
    %313 = arith.divf %311, %312 : vector<1x32xf32>
    %314 = tpu.concatenate %308, %313 in 0 : vector<1x32xf32>, vector<1x32xf32> -> vector<2x32xf32>
    %c0_107 = arith.constant 0 : index
    %c0_108 = arith.constant 0 : index
    %315 = vector.load %arg13[%c0_107, %c0_108] : memref<2x32xf32, #tpu.memory_space<vmem>>, vector<2x32xf32>
    tpu.vector_store %arg13[%c0_107, %c0_108], %314 {strides = array<i32>} : memref<2x32xf32, #tpu.memory_space<vmem>>, vector<2x32xf32>,
    return
  }
}

</mosaic_0001>

<llo_original>
// kernel: text_embedding_forward.1
$region0: #{text_embedding_forward.1}
  #allocation0 [shape = 'u32[]', space=smem, size = 0x4, offset = 0x4, fixed_abs, tag = 'smem constant byte address 0x4 - core index']
  #allocation1 [shape = 'u32[144,128]{1,0:T(1,128)}', space=vmem, size = 0x12000, scoped, tag = 'internal scratch']
  %s0 = inlined_call_operand.vmem [shape: s32[16,1], index: 0, kind: input, shape index: {}]
  %s1 = inlined_call_operand.vmem [shape: f32[1,64], index: 1, kind: input, shape index: {}]
  %s2 = inlined_call_operand.vmem [shape: f32[64,64], index: 2, kind: input, shape index: {}]
  %s3 = inlined_call_operand.vmem [shape: bf16[100,32], index: 3, kind: input, shape index: {}]
  %s4 = inlined_call_operand.vmem [shape: f32[8,32], index: 4, kind: input, shape index: {}]
  %s5 = inlined_call_operand.vmem [shape: f32[2,32], index: 5, kind: input, shape index: {}]
  %s6 = inlined_call_operand.vmem [shape: bf16[2,32,96], index: 6, kind: input, shape index: {}]
  %s7 = inlined_call_operand.vmem [shape: f32[2,1,96], index: 7, kind: input, shape index: {}]
  %s8 = inlined_call_operand.vmem [shape: bf16[2,32,32], index: 8, kind: input, shape index: {}]
  %s9 = inlined_call_operand.vmem [shape: bf16[2,32,64], index: 9, kind: input, shape index: {}]
  %s10 = inlined_call_operand.vmem [shape: f32[2,1,64], index: 10, kind: input, shape index: {}]
  %s11 = inlined_call_operand.vmem [shape: bf16[2,64,32], index: 11, kind: input, shape index: {}]
  %s12 = inlined_call_operand.vmem [shape: f32[2,6,32], index: 12, kind: input, shape index: {}]
  %s13 = inlined_call_operand.hbm [shape: f32[2,32], index: 13, kind: output, shape index: {}]
  %s14 = sld [smem:[#allocation0]]
  $region62: #{text_embedding_forward.1} parent=0
    _
  %s16 = ssub.s32 1, %s14
  %s17 = scalar_select 0, %s16, %s14
  $region1: #{text_embedding_forward.1} parent=0
    #allocation2 [shape = 'u8[1024]{0}', space=vmem, size = 0x400, scoped, tag = 'output window, operand 0, single buffered']
    #allocation3 [shape = 's32[1]{0}', space=sflag, size = 0x4, scoped, tag = 'scoped memory for text_embedding_forward.1']
    %18 = vsyncpa [#allocation3], 0
    // Predicated region
    $region2: #{text_embedding_forward.1} parent=1 // pred_check
      _
    $region3: #{text_embedding_forward.1} parent=1 // pred_check_branch
      %20 = sbr.rel (0) target = $region5
    $region4: #{text_embedding_forward.1} parent=1 // pred_region
      _
    $region5: #{text_embedding_forward.1} parent=1 // pred_fallthru
      _
    // Predicated region
    $region6: #{text_embedding_forward.1} parent=1 // pred_check
      _
    $region7: #{text_embedding_forward.1} parent=1 // pred_check_branch
      %22 = sbr.rel (0) target = $region9
    $region8: #{text_embedding_forward.1} parent=1 // pred_region
      _
    $region9: #{text_embedding_forward.1} parent=1 // pred_fallthru
      _
    // Predicated region
    $region10: #{text_embedding_forward.1} parent=1 // pred_check
      _
    $region11: #{text_embedding_forward.1} parent=1 // pred_check_branch
      %24 = sbr.rel (0) target = $region13
    $region12: #{text_embedding_forward.1} parent=1 // pred_region
      _
    $region13: #{text_embedding_forward.1} parent=1 // pred_fallthru
      _
    // Predicated region
    $region14: #{text_embedding_forward.1} parent=1 // pred_check
      _
    $region15: #{text_embedding_forward.1} parent=1 // pred_check_branch
      %26 = sbr.rel (0) target = $region17
    $region16: #{text_embedding_forward.1} parent=1 // pred_region
      _
    $region17: #{text_embedding_forward.1} parent=1 // pred_fallthru
      _
    // Predicated region
    $region18: #{text_embedding_forward.1} parent=1 // pred_check
      _
    $region19: #{text_embedding_forward.1} parent=1 // pred_check_branch
      %28 = sbr.rel (0) target = $region21
    $region20: #{text_embedding_forward.1} parent=1 // pred_region
      _
    $region21: #{text_embedding_forward.1} parent=1 // pred_fallthru
      _
    // Predicated region
    $region22: #{text_embedding_forward.1} parent=1 // pred_check
      _
    $region23: #{text_embedding_forward.1} parent=1 // pred_check_branch
      %30 = sbr.rel (0) target = $region25
    $region24: #{text_embedding_forward.1} parent=1 // pred_region
      _
    $region25: #{text_embedding_forward.1} parent=1 // pred_fallthru
      _
    // Predicated region
    $region26: #{text_embedding_forward.1} parent=1 // pred_check
      _
    $region27: #{text_embedding_forward.1} parent=1 // pred_check_branch
      %32 = sbr.rel (0) target = $region29
    $region28: #{text_embedding_forward.1} parent=1 // pred_region
      _
    $region29: #{text_embedding_forward.1} parent=1 // pred_fallthru
      _
    // Predicated region
    $region30: #{text_embedding_forward.1} parent=1 // pred_check
      _
    $region31: #{text_embedding_forward.1} parent=1 // pred_check_branch
      %34 = sbr.rel (0) target = $region33
    $region32: #{text_embedding_forward.1} parent=1 // pred_region
      _
    $region33: #{text_embedding_forward.1} parent=1 // pred_fallthru
      _
    // Predicated region
    $region34: #{text_embedding_forward.1} parent=1 // pred_check
      _
    $region35: #{text_embedding_forward.1} parent=1 // pred_check_branch
      %36 = sbr.rel (0) target = $region37
    $region36: #{text_embedding_forward.1} parent=1 // pred_region
      _
    $region37: #{text_embedding_forward.1} parent=1 // pred_fallthru
      _
    // Predicated region
    $region38: #{text_embedding_forward.1} parent=1 // pred_check
      _
    $region39: #{text_embedding_forward.1} parent=1 // pred_check_branch
      %38 = sbr.rel (0) target = $region41
    $region40: #{text_embedding_forward.1} parent=1 // pred_region
      _
    $region41: #{text_embedding_forward.1} parent=1 // pred_fallthru
      _
    // Predicated region
    $region42: #{text_embedding_forward.1} parent=1 // pred_check
      _
    $region43: #{text_embedding_forward.1} parent=1 // pred_check_branch
      %40 = sbr.rel (0) target = $region45
    $region44: #{text_embedding_forward.1} parent=1 // pred_region
      _
    $region45: #{text_embedding_forward.1} parent=1 // pred_fallthru
      _
    // Predicated region
    $region46: #{text_embedding_forward.1} parent=1 // pred_check
      _
    $region47: #{text_embedding_forward.1} parent=1 // pred_check_branch
      %42 = sbr.rel (0) target = $region49
    $region48: #{text_embedding_forward.1} parent=1 // pred_region
      _
    $region49: #{text_embedding_forward.1} parent=1 // pred_fallthru
      _
    // Predicated region
    $region50: #{text_embedding_forward.1} parent=1 // pred_check
      _
    $region51: #{text_embedding_forward.1} parent=1 // pred_check_branch
      %44 = sbr.rel (0) target = $region53
    $region52: #{text_embedding_forward.1} parent=1 // pred_region
      _
    $region53: #{text_embedding_forward.1} parent=1 // pred_fallthru
      _
    %v46 = vlaneseq
    %v47 = vand.u32 %v46, 127
    %v48 = vld [vmem:[%s0] sm:$0xff]
    %v49 = vld [vmem:[%s0 + $0x8] sm:$0xff]
    %50 = vset.pattern.permute.xlu0 0
    %51 = vperm.xlu0 %50, %v48
    %v52 = vpop.permute.xlu0 %51
    %53 = vset.pattern.permute.xlu0 0
    %54 = vperm.xlu0 %53, %v49
    %v55 = vpop.permute.xlu0 %54
    %vm56 = vcmp.eq.s32.totalorder %v52, %v47
    %vm57 = vcmp.eq.s32.totalorder %v55, %v47
    %v58 = vsel %vm56, 1, 0
    %v59 = vsel %vm57, 1, 0
    %v60 = vcvt.s32.f32 %v58
    %v61 = vcvt.s32.f32 %v59
    %v62 = vpack.c.bf16 %v61, %v60
    %v63 = vld [vmem:[%s3] sm:$0xf]
    %v64 = vld [vmem:[%s3 + $0x4] sm:$0xf]
    %v65 = vld [vmem:[%s3 + $0x8] sm:$0xf]
    %v66 = vld [vmem:[%s3 + $0xc] sm:$0xf]
    %v67 = vld [vmem:[%s3 + $0x10] sm:$0xf]
    %v68 = vld [vmem:[%s3 + $0x14] sm:$0xf]
    %v69 = vld [vmem:[%s3 + $0x18] sm:$0xf]
    %v70 = vld [vmem:[%s3 + $0x1c] sm:$0xf]
    %v71 = vld [vmem:[%s3 + $0x20] sm:$0xf]
    %v72 = vld [vmem:[%s3 + $0x24] sm:$0xf]
    %v73 = vld [vmem:[%s3 + $0x28] sm:$0xf]
    %v74 = vld [vmem:[%s3 + $0x2c] sm:$0xf]
    %v75 = vld [vmem:[%s3 + $0x30] sm:$0x3]
    %v76 = vld [vmem:[%s4] sm:$0xff]
    %v90 = vunpack.c.l.b16 %v63
    %v91 = vunpack.c.l.b16 %v64
    %v92 = vunpack.c.l.b16 %v65
    %v93 = vunpack.c.l.b16 %v66
    %v94 = vunpack.c.l.b16 %v67
    %v95 = vunpack.c.l.b16 %v68
    %v96 = vunpack.c.l.b16 %v69
    %v97 = vunpack.c.l.b16 %v70
    %v98 = vunpack.c.l.b16 %v71
    %v99 = vunpack.c.l.b16 %v72
    %v100 = vunpack.c.l.b16 %v73
    %v101 = vunpack.c.l.b16 %v74
    %v102 = vunpack.c.l.b16 %v75
    %v103 = vpack.c.b16 %v91, %v90
    %v104 = vpack.c.b16 %v93, %v92
    %v105 = vpack.c.b16 %v95, %v94
    %v106 = vpack.c.b16 %v97, %v96
    %v107 = vpack.c.b16 %v99, %v98
    %v108 = vpack.c.b16 %v101, %v100
    %v109 = vpack.c.b16 %v102, %v102
    %vm116 = vcmask 818176
    %v118 = vsel %vm116, %v62, 0
    %vm120 = vcmask 1041408
    %v122 = vsel %vm120, %v109, 0
    %124 = vmatprep.subr.bf16.mxu0 0
    %125 = vmatpush1.bf16.msra.mxu0 0
    %126 = vmatprep.subr.bf16.mxu0 0
    %127 = vmatpush1.bf16.msra.mxu0 %v122
    %128 = vmatprep.subr.bf16.mxu0 0
    %129 = vmatpush1.bf16.msra.mxu0 %v108
    %130 = vmatprep.subr.bf16.mxu0 0
    %131 = vmatpush1.bf16.msra.mxu0 %v107
    %132 = vmatprep.subr.bf16.mxu0 0
    %133 = vmatpush1.bf16.msra.mxu0 %v106
    %134 = vmatprep.subr.bf16.mxu0 0
    %135 = vmatpush1.bf16.msra.mxu0 %v105
    %136 = vmatprep.subr.bf16.mxu0 0
    %137 = vmatpush1.bf16.msra.mxu0 %v104
    %138 = vmatprep.subr.bf16.mxu0 0
    %139 = vmatpush1.bf16.msra.mxu0 %v103
    %140 = vmatprep.subr.bf16.mxu0 0
    %141 = vmatpush2.bf16.msra.mxu0 0
    %142 = vmatprep.subr.bf16.mxu0 0
    %143 = vmatpush2.bf16.msra.mxu0 0
    %144 = vmatprep.subr.bf16.mxu0 0
    %145 = vmatpush2.bf16.msra.mxu0 0
    %146 = vmatprep.subr.bf16.mxu0 0
    %147 = vmatpush2.bf16.msra.mxu0 0
    %148 = vmatprep.subr.bf16.mxu0 0
    %149 = vmatpush2.bf16.msra.mxu0 0
    %150 = vmatprep.subr.bf16.mxu0 0
    %151 = vmatpush2.bf16.msra.mxu0 0
    %152 = vmatprep.subr.bf16.mxu0 0
    %153 = vmatpush2.bf16.msra.mxu0 0
    %154 = vmatprep.subr.bf16.mxu0 0
    %155 = vmatpush2.bf16.msra.mxu0 0
    %156 = vmatprep.mubr.bf16.mxu0 0
    %157 = vmatmul.mubr.bf16.gmra.mxu0 %v118
    %v158 = vpop.f32.mrf.mxu0
    %v159 = vadd.f32 %v76, %v158
    %v160 = vpop.f32.mrf.mxu0
    %v161 = vpop.f32.mrf.mxu0
    %v162 = vadd.f32 %v76, %v161
    %v163 = vpop.f32.mrf.mxu0
    %164 = vdwg.mxu0
    %v165 = vld [vmem:[%s5] sm:$0x1]
    %v166 = vld [vmem:[%s5 + $0x1] sm:$0x1]
    %vm167 = vcmask 261120
    %v168 = vsel %vm167, %v159, 0.0
    %169 = vadd.xlane.f32.xlu0 %v168
    %v170 = vpop.xlane.xlu0 %169
    %v171 = vsel %vm167, %v162, 0.0
    %172 = vadd.xlane.f32.xlu0 %v171
    %v173 = vpop.xlane.xlu0 %172
    %v174 = vrcp.pop 32.0
    %v175 = vmul.f32 %v170, %v174
    %v176 = vmul.f32 %v173, %v174
    %v177 = vsub.f32 %v159, %v175
    %v178 = vsub.f32 %v162, %v176
    %v179 = vmul.f32 %v177, %v177
    %v180 = vmul.f32 %v178, %v178
    %v181 = vsel %vm167, %v179, 0.0
    %182 = vadd.xlane.f32.xlu0 %v181
    %v183 = vpop.xlane.xlu0 %182
    %v184 = vsel %vm167, %v180, 0.0
    %185 = vadd.xlane.f32.xlu0 %v184
    %v186 = vpop.xlane.xlu0 %185
    %v187 = vmul.f32 %v183, %v174
    %v188 = vmul.f32 %v186, %v174
    %v189 = vadd.f32 %v187, 1e-12
    %v190 = vadd.f32 %v188, 1e-12
    %v191 = vrsqrt.pop %v189
    %v192 = vrsqrt.pop %v190
    %v193 = vmul.f32 %v177, %v191
    %v194 = vmul.f32 %v178, %v192
    %v195 = vlaneseq
    %v196 = vshrl.u32 %v195, 7
    %v197 = vsub.s32 0, %v196
    %v198 = vrot.slane %v165, %v197
    %v199 = vmul.f32 %v193, %v198
    %v200 = vmul.f32 %v194, %v198
    %v201 = vlaneseq
    %v202 = vshrl.u32 %v201, 7
    %v203 = vsub.s32 0, %v202
    %v204 = vrot.slane %v166, %v203
    %v205 = vadd.f32 %v199, %v204
    %v206 = vadd.f32 %v200, %v204
    %v207 = vld [vmem:[%s2] sm:$0xff]
    %v208 = vld [vmem:[%s2 + $0x8] sm:$0xff]
    %v209 = vld [vmem:[%s2 + $0x10] sm:$0xff]
    %v210 = vld [vmem:[%s2 + $0x18] sm:$0xff]
    %v211 = vld [vmem:[%s2 + $0x20] sm:$0xff]
    %v212 = vld [vmem:[%s2 + $0x28] sm:$0xff]
    %v213 = vld [vmem:[%s2 + $0x30] sm:$0xff]
    %v214 = vld [vmem:[%s2 + $0x38] sm:$0xff]
    %v215 = vld [vmem:[%s1] sm:$0x1]
    %v217 = vlaneseq
    %v218 = vshrl.u32 %v217, 7
    %v219 = vsub.s32 0, %v218
    %v220 = vrot.slane %v215, %v219
    %v222 = vadd.f32 %v207, %v220
    %v223 = vadd.f32 %v208, %v220
    %v224 = vadd.f32 %v209, %v220
    %v225 = vadd.f32 %v210, %v220
    %v226 = vadd.f32 %v211, %v220
    %v227 = vadd.f32 %v212, %v220
    %v228 = vadd.f32 %v213, %v220
    %v229 = vadd.f32 %v214, %v220
    %v230 = vpack.c.bf16 %v206, %v205
    %v231 = vld [vmem:[%s6] sm:$0xf]
    %v232 = vld [vmem:[%s6 + $0x4] sm:$0xf]
    %v233 = vld [vmem:[%s6 + $0x8] sm:$0xf]
    %v234 = vld [vmem:[%s6 + $0xc] sm:$0xf]
    %v235 = vld [vmem:[%s7] sm:$0x1]
    %v237 = vlaneseq
    %v238 = vshrl.u32 %v237, 7
    %v239 = vsub.s32 0, %v238
    %v240 = vrot.slane %v235, %v239
    %v246 = vunpack.c.l.b16 %v231
    %v247 = vunpack.c.l.b16 %v232
    %v248 = vunpack.c.l.b16 %v233
    %v249 = vunpack.c.l.b16 %v234
    %v250 = vpack.c.b16 %v247, %v246
    %v251 = vpack.c.b16 %v249, %v248
    %v255 = vsel %vm167, %v230, 0
    %257 = vmatprep.subr.bf16.mxu0 0
    %258 = vmatpush1.bf16.msra.mxu0 0
    %259 = vmatprep.subr.bf16.mxu0 0
    %260 = vmatpush1.bf16.msra.mxu0 0
    %261 = vmatprep.subr.bf16.mxu0 0
    %262 = vmatpush1.bf16.msra.mxu0 0
    %263 = vmatprep.subr.bf16.mxu0 0
    %264 = vmatpush1.bf16.msra.mxu0 0
    %265 = vmatprep.subr.bf16.mxu0 0
    %266 = vmatpush1.bf16.msra.mxu0 0
    %267 = vmatprep.subr.bf16.mxu0 0
    %268 = vmatpush1.bf16.msra.mxu0 0
    %269 = vmatprep.subr.bf16.mxu0 0
    %270 = vmatpush1.bf16.msra.mxu0 %v251
    %271 = vmatprep.subr.bf16.mxu0 0
    %272 = vmatpush1.bf16.msra.mxu0 %v250
    %273 = vmatprep.subr.bf16.mxu0 0
    %274 = vmatpush2.bf16.msra.mxu0 0
    %275 = vmatprep.subr.bf16.mxu0 0
    %276 = vmatpush2.bf16.msra.mxu0 0
    %277 = vmatprep.subr.bf16.mxu0 0
    %278 = vmatpush2.bf16.msra.mxu0 0
    %279 = vmatprep.subr.bf16.mxu0 0
    %280 = vmatpush2.bf16.msra.mxu0 0
    %281 = vmatprep.subr.bf16.mxu0 0
    %282 = vmatpush2.bf16.msra.mxu0 0
    %283 = vmatprep.subr.bf16.mxu0 0
    %284 = vmatpush2.bf16.msra.mxu0 0
    %285 = vmatprep.subr.bf16.mxu0 0
    %286 = vmatpush2.bf16.msra.mxu0 0
    %287 = vmatprep.subr.bf16.mxu0 0
    %288 = vmatpush2.bf16.msra.mxu0 0
    %289 = vmatprep.mubr.bf16.mxu0 0
    %290 = vmatmul.mubr.bf16.gmra.mxu0 %v255
    %v291 = vpop.f32.mrf.mxu0
    %v292 = vadd.f32 %v240, %v291
    %v293 = vpop.f32.mrf.mxu0
    %v294 = vpop.f32.mrf.mxu0
    %v295 = vadd.f32 %v240, %v294
    %v296 = vpop.f32.mrf.mxu0
    %297 = vdwg.mxu0
    %300 = vrot.lane.b32.xlu0 %v292, 120
    %v301 = vpop.permute.xlu0 %300
    %302 = vrot.lane.b32.xlu0 %v295, 120
    %v303 = vpop.permute.xlu0 %302
    %306 = vrot.lane.b32.xlu0 %v292, 112
    %v307 = vpop.permute.xlu0 %306
    %308 = vrot.lane.b32.xlu0 %v295, 112
    %v309 = vpop.permute.xlu0 %308
    %312 = vrot.lane.b32.xlu0 %v292, 104
    %v313 = vpop.permute.xlu0 %312
    %314 = vrot.lane.b32.xlu0 %v295, 104
    %v315 = vpop.permute.xlu0 %314
    %v318 = vpack.c.bf16 %v295, %v292
    %v319 = vpack.c.bf16 %v303, %v301
    %v320 = vpack.c.bf16 %v309, %v307
    %v321 = vpack.c.bf16 %v315, %v313
    %326 = vrot.lane.b32.xlu0 %v318, 96
    %v327 = vpop.permute.xlu0 %326
    %328 = vrot.lane.b32.xlu0 %v319, 96
    %v329 = vpop.permute.xlu0 %328
    %330 = vrot.lane.b32.xlu0 %v320, 96
    %v331 = vpop.permute.xlu0 %330
    %332 = vrot.lane.b32.xlu0 %v321, 96
    %v333 = vpop.permute.xlu0 %332
    %vm334 = vcmask 64512
    %v336 = vsel %vm334, %v318, 0
    %v339 = vsel %vm334, %v319, 0
    %v342 = vsel %vm334, %v320, 0
    %v345 = vsel %vm334, %v321, 0
    %v348 = vsel %vm334, %v327, 0
    %v351 = vsel %vm334, %v329, 0
    %v354 = vsel %vm334, %v331, 0
    %v357 = vsel %vm334, %v333, 0
    %359 = vmatprep.subr.bf16.mxu0 0
    %360 = vmatpush1.bf16.xpose.msra.mxu0 0
    %361 = vmatprep.subr.bf16.mxu0 0
    %362 = vmatpush1.bf16.xpose.msra.mxu0 0
    %363 = vmatprep.subr.bf16.mxu0 0
    %364 = vmatpush1.bf16.xpose.msra.mxu0 0
    %365 = vmatprep.subr.bf16.mxu0 0
    %366 = vmatpush1.bf16.xpose.msra.mxu0 0
    %367 = vmatprep.subr.bf16.mxu0 0
    %368 = vmatpush1.bf16.xpose.msra.mxu0 %v357
    %369 = vmatprep.subr.bf16.mxu0 0
    %370 = vmatpush1.bf16.xpose.msra.mxu0 %v354
    %371 = vmatprep.subr.bf16.mxu0 0
    %372 = vmatpush1.bf16.xpose.msra.mxu0 %v351
    %373 = vmatprep.subr.bf16.mxu0 0
    %374 = vmatpush1.bf16.xpose.msra.mxu0 %v348
    %375 = vmatprep.subr.bf16.mxu0 0
    %376 = vmatpush2.bf16.xpose.msra.mxu0 0
    %377 = vmatprep.subr.bf16.mxu0 0
    %378 = vmatpush2.bf16.xpose.msra.mxu0 0
    %379 = vmatprep.subr.bf16.mxu0 0
    %380 = vmatpush2.bf16.xpose.msra.mxu0 0
    %381 = vmatprep.subr.bf16.mxu0 0
    %382 = vmatpush2.bf16.xpose.msra.mxu0 0
    %383 = vmatprep.subr.bf16.mxu0 0
    %384 = vmatpush2.bf16.xpose.msra.mxu0 0
    %385 = vmatprep.subr.bf16.mxu0 0
    %386 = vmatpush2.bf16.xpose.msra.mxu0 0
    %387 = vmatprep.subr.bf16.mxu0 0
    %388 = vmatpush2.bf16.xpose.msra.mxu0 0
    %389 = vmatprep.subr.bf16.mxu0 0
    %390 = vmatpush2.bf16.xpose.msra.mxu0 0
    %391 = vmatprep.mubr.bf16.mxu0 0
    %392 = vmatmul.mubr.bf16.gmra.mxu0 %v336
    %v393 = vpop.f32.mrf.mxu0
    %v394 = vadd.f32 %v222, %v393
    %v395 = vpop.f32.mrf.mxu0
    %v396 = vpop.f32.mrf.mxu0
    %v397 = vadd.f32 %v223, %v396
    %v398 = vpop.f32.mrf.mxu0
    %399 = vmatprep.mubr.bf16.mxu0 0
    %400 = vmatmul.mubr.bf16.gmra.mxu0 %v339
    %v401 = vpop.f32.mrf.mxu0
    %v402 = vadd.f32 %v224, %v401
    %v403 = vpop.f32.mrf.mxu0
    %v404 = vpop.f32.mrf.mxu0
    %v405 = vadd.f32 %v225, %v404
    %v406 = vpop.f32.mrf.mxu0
    %407 = vmatprep.mubr.bf16.mxu0 0
    %408 = vmatmul.mubr.bf16.gmra.mxu0 %v342
    %v409 = vpop.f32.mrf.mxu0
    %v410 = vadd.f32 %v226, %v409
    %v411 = vpop.f32.mrf.mxu0
    %v412 = vpop.f32.mrf.mxu0
    %v413 = vadd.f32 %v227, %v412
    %v414 = vpop.f32.mrf.mxu0
    %415 = vmatprep.mubr.bf16.mxu0 0
    %416 = vmatmul.mubr.bf16.gmra.mxu0 %v345
    %v417 = vpop.f32.mrf.mxu0
    %v418 = vadd.f32 %v228, %v417
    %v419 = vpop.f32.mrf.mxu0
    %v420 = vpop.f32.mrf.mxu0
    %v421 = vadd.f32 %v229, %v420
    %v422 = vpop.f32.mrf.mxu0
    %423 = vdwg.mxu0
    %vm424 = vcmask 523264
    %v425 = vsel %vm424, %v394, -inf
    %426 = vmax.xlane.f32.xlu0 %v425
    %v427 = vpop.xlane.xlu0 %426
    %v428 = vsel %vm424, %v397, -inf
    %429 = vmax.xlane.f32.xlu0 %v428
    %v430 = vpop.xlane.xlu0 %429
    %v431 = vsel %vm424, %v402, -inf
    %432 = vmax.xlane.f32.xlu0 %v431
    %v433 = vpop.xlane.xlu0 %432
    %v434 = vsel %vm424, %v405, -inf
    %435 = vmax.xlane.f32.xlu0 %v434
    %v436 = vpop.xlane.xlu0 %435
    %v437 = vsel %vm424, %v410, -inf
    %438 = vmax.xlane.f32.xlu0 %v437
    %v439 = vpop.xlane.xlu0 %438
    %v440 = vsel %vm424, %v413, -inf
    %441 = vmax.xlane.f32.xlu0 %v440
    %v442 = vpop.xlane.xlu0 %441
    %v443 = vsel %vm424, %v418, -inf
    %444 = vmax.xlane.f32.xlu0 %v443
    %v445 = vpop.xlane.xlu0 %444
    %v446 = vsel %vm424, %v421, -inf
    %447 = vmax.xlane.f32.xlu0 %v446
    %v448 = vpop.xlane.xlu0 %447
    %v449 = vsub.f32 %v394, %v427
    %v450 = vsub.f32 %v397, %v430
    %v451 = vsub.f32 %v402, %v433
    %v452 = vsub.f32 %v405, %v436
    %v453 = vsub.f32 %v410, %v439
    %v454 = vsub.f32 %v413, %v442
    %v455 = vsub.f32 %v418, %v445
    %v456 = vsub.f32 %v421, %v448
    %v457 = vmul.f32 %v449, 1.442695
    %v458 = vpow.pop %v457
    %v459 = vmul.f32 %v450, 1.442695
    %v460 = vpow.pop %v459
    %v461 = vmul.f32 %v451, 1.442695
    %v462 = vpow.pop %v461
    %v463 = vmul.f32 %v452, 1.442695
    %v464 = vpow.pop %v463
    %v465 = vmul.f32 %v453, 1.442695
    %v466 = vpow.pop %v465
    %v467 = vmul.f32 %v454, 1.442695
    %v468 = vpow.pop %v467
    %v469 = vmul.f32 %v455, 1.442695
    %v470 = vpow.pop %v469
    %v471 = vmul.f32 %v456, 1.442695
    %v472 = vpow.pop %v471
    %v473 = vsel %vm424, %v458, 0.0
    %474 = vadd.xlane.f32.xlu0 %v473
    %v475 = vpop.xlane.xlu0 %474
    %v476 = vsel %vm424, %v460, 0.0
    %477 = vadd.xlane.f32.xlu0 %v476
    %v478 = vpop.xlane.xlu0 %477
    %v479 = vsel %vm424, %v462, 0.0
    %480 = vadd.xlane.f32.xlu0 %v479
    %v481 = vpop.xlane.xlu0 %480
    %v482 = vsel %vm424, %v464, 0.0
    %483 = vadd.xlane.f32.xlu0 %v482
    %v484 = vpop.xlane.xlu0 %483
    %v485 = vsel %vm424, %v466, 0.0
    %486 = vadd.xlane.f32.xlu0 %v485
    %v487 = vpop.xlane.xlu0 %486
    %v488 = vsel %vm424, %v468, 0.0
    %489 = vadd.xlane.f32.xlu0 %v488
    %v490 = vpop.xlane.xlu0 %489
    %v491 = vsel %vm424, %v470, 0.0
    %492 = vadd.xlane.f32.xlu0 %v491
    %v493 = vpop.xlane.xlu0 %492
    %v494 = vsel %vm424, %v472, 0.0
    %495 = vadd.xlane.f32.xlu0 %v494
    %v496 = vpop.xlane.xlu0 %495
    %v497 = vrcp.pop %v475
    %v498 = vrcp.pop %v478
    %v499 = vrcp.pop %v481
    %v500 = vrcp.pop %v484
    %v501 = vrcp.pop %v487
    %v502 = vrcp.pop %v490
    %v503 = vrcp.pop %v493
    %v504 = vrcp.pop %v496
    %v505 = vmul.f32 %v458, %v497
    %v506 = vmul.f32 %v460, %v498
    %v507 = vmul.f32 %v462, %v499
    %v508 = vmul.f32 %v464, %v500
    %v509 = vmul.f32 %v466, %v501
    %v510 = vmul.f32 %v468, %v502
    %v511 = vmul.f32 %v470, %v503
    %v512 = vmul.f32 %v472, %v504
    %v513 = vpack.c.bf16 %v506, %v505
    %v514 = vpack.c.bf16 %v508, %v507
    %v515 = vpack.c.bf16 %v510, %v509
    %v516 = vpack.c.bf16 %v512, %v511
    %517 = vrot.lane.b32.xlu0 %v318, 64
    %v518 = vpop.permute.xlu0 %517
    %519 = vrot.lane.b32.xlu0 %v319, 64
    %v520 = vpop.permute.xlu0 %519
    %521 = vrot.lane.b32.xlu0 %v320, 64
    %v522 = vpop.permute.xlu0 %521
    %523 = vrot.lane.b32.xlu0 %v321, 64
    %v524 = vpop.permute.xlu0 %523
    %v530 = vsel %vm424, %v513, 0
    %v533 = vsel %vm424, %v514, 0
    %v536 = vsel %vm424, %v515, 0
    %v539 = vsel %vm424, %v516, 0
    %541 = vmatprep.subr.bf16.mxu0 0
    %542 = vmatpush1.bf16.msra.mxu0 0
    %543 = vmatprep.subr.bf16.mxu0 0
    %544 = vmatpush1.bf16.msra.mxu0 0
    %545 = vmatprep.subr.bf16.mxu0 0
    %546 = vmatpush1.bf16.msra.mxu0 0
    %547 = vmatprep.subr.bf16.mxu0 0
    %548 = vmatpush1.bf16.msra.mxu0 0
    %549 = vmatprep.subr.bf16.mxu0 0
    %550 = vmatpush1.bf16.msra.mxu0 %v524
    %551 = vmatprep.subr.bf16.mxu0 0
    %552 = vmatpush1.bf16.msra.mxu0 %v522
    %553 = vmatprep.subr.bf16.mxu0 0
    %554 = vmatpush1.bf16.msra.mxu0 %v520
    %555 = vmatprep.subr.bf16.mxu0 0
    %556 = vmatpush1.bf16.msra.mxu0 %v518
    %557 = vmatprep.subr.bf16.mxu0 0
    %558 = vmatpush2.bf16.msra.mxu0 0
    %559 = vmatprep.subr.bf16.mxu0 0
    %560 = vmatpush2.bf16.msra.mxu0 0
    %561 = vmatprep.subr.bf16.mxu0 0
    %562 = vmatpush2.bf16.msra.mxu0 0
    %563 = vmatprep.subr.bf16.mxu0 0
    %564 = vmatpush2.bf16.msra.mxu0 0
    %565 = vmatprep.subr.bf16.mxu0 0
    %566 = vmatpush2.bf16.msra.mxu0 0
    %567 = vmatprep.subr.bf16.mxu0 0
    %568 = vmatpush2.bf16.msra.mxu0 0
    %569 = vmatprep.subr.bf16.mxu0 0
    %570 = vmatpush2.bf16.msra.mxu0 0
    %571 = vmatprep.subr.bf16.mxu0 0
    %572 = vmatpush2.bf16.msra.mxu0 0
    %573 = vmatprep.mubr.bf16.mxu0 0
    %574 = vmatmul.mubr.bf16.gmra.mxu0 %v530
    %v575 = vpop.f32.mrf.mxu0
    %v576 = vadd.f32 0.0, %v575
    %v577 = vpop.f32.mrf.mxu0
    %v578 = vpop.f32.mrf.mxu0
    %v579 = vadd.f32 0.0, %v578
    %v580 = vpop.f32.mrf.mxu0
    %581 = vmatprep.mubr.bf16.mxu0 0
    %582 = vmatmul.mubr.bf16.gmra.mxu0 %v533
    %v583 = vpop.f32.mrf.mxu0
    %v584 = vadd.f32 0.0, %v583
    %v585 = vpop.f32.mrf.mxu0
    %v586 = vpop.f32.mrf.mxu0
    %v587 = vadd.f32 0.0, %v586
    %v588 = vpop.f32.mrf.mxu0
    %589 = vmatprep.mubr.bf16.mxu0 0
    %590 = vmatmul.mubr.bf16.gmra.mxu0 %v536
    %v591 = vpop.f32.mrf.mxu0
    %v592 = vadd.f32 0.0, %v591
    %v593 = vpop.f32.mrf.mxu0
    %v594 = vpop.f32.mrf.mxu0
    %v595 = vadd.f32 0.0, %v594
    %v596 = vpop.f32.mrf.mxu0
    %597 = vmatprep.mubr.bf16.mxu0 0
    %598 = vmatmul.mubr.bf16.gmra.mxu0 %v539
    %v599 = vpop.f32.mrf.mxu0
    %v600 = vadd.f32 0.0, %v599
    %v601 = vpop.f32.mrf.mxu0
    %v602 = vpop.f32.mrf.mxu0
    %v603 = vadd.f32 0.0, %v602
    %v604 = vpop.f32.mrf.mxu0
    %605 = vdwg.mxu0
    %608 = vrot.lane.b32.xlu0 %v584, 8
    %v609 = vpop.permute.xlu0 %608
    %610 = vrot.lane.b32.xlu0 %v587, 8
    %v611 = vpop.permute.xlu0 %610
    %616 = vrot.lane.b32.xlu0 %v592, 16
    %v617 = vpop.permute.xlu0 %616
    %618 = vrot.lane.b32.xlu0 %v595, 16
    %v619 = vpop.permute.xlu0 %618
    %624 = vrot.lane.b32.xlu0 %v600, 24
    %v625 = vpop.permute.xlu0 %624
    %626 = vrot.lane.b32.xlu0 %v603, 24
    %v627 = vpop.permute.xlu0 %626
    %v630 = vsel %vm334, %v576, %v609
    %v631 = vsel %vm334, %v579, %v611
    %vm632 = vcmask 130048
    %v633 = vsel %vm632, %v630, %v617
    %v634 = vsel %vm632, %v631, %v619
    %vm635 = vcmask 195584
    %v636 = vsel %vm635, %v633, %v625
    %v637 = vsel %vm635, %v634, %v627
    %v638 = vld [vmem:[%s12] sm:$0x3f]
    %v639 = vpack.c.bf16 %v637, %v636
    %v640 = vld [vmem:[%s8] sm:$0xf]
    %v641 = vld [vmem:[%s8 + $0x4] sm:$0xf]
    %v642 = vld [vmem:[%s8 + $0x8] sm:$0xf]
    %v643 = vld [vmem:[%s8 + $0xc] sm:$0xf]
    %v644 = vlaneseq
    %v645 = vshrl.u32 %v644, 7
    %v646 = vsub.s32 0, %v645
    %v647 = vrot.slane %v638, %v646
    %v652 = vunpack.c.l.b16 %v640
    %v653 = vunpack.c.l.b16 %v641
    %v654 = vunpack.c.l.b16 %v642
    %v655 = vunpack.c.l.b16 %v643
    %v656 = vpack.c.b16 %v653, %v652
    %v657 = vpack.c.b16 %v655, %v654
    %v661 = vsel %vm167, %v639, 0
    %663 = vmatprep.subr.bf16.mxu0 0
    %664 = vmatpush1.bf16.msra.mxu0 0
    %665 = vmatprep.subr.bf16.mxu0 0
    %666 = vmatpush1.bf16.msra.mxu0 0
    %667 = vmatprep.subr.bf16.mxu0 0
    %668 = vmatpush1.bf16.msra.mxu0 0
    %669 = vmatprep.subr.bf16.mxu0 0
    %670 = vmatpush1.bf16.msra.mxu0 0
    %671 = vmatprep.subr.bf16.mxu0 0
    %672 = vmatpush1.bf16.msra.mxu0 0
    %673 = vmatprep.subr.bf16.mxu0 0
    %674 = vmatpush1.bf16.msra.mxu0 0
    %675 = vmatprep.subr.bf16.mxu0 0
    %676 = vmatpush1.bf16.msra.mxu0 %v657
    %677 = vmatprep.subr.bf16.mxu0 0
    %678 = vmatpush1.bf16.msra.mxu0 %v656
    %679 = vmatprep.subr.bf16.mxu0 0
    %680 = vmatpush2.bf16.msra.mxu0 0
    %681 = vmatprep.subr.bf16.mxu0 0
    %682 = vmatpush2.bf16.msra.mxu0 0
    %683 = vmatprep.subr.bf16.mxu0 0
    %684 = vmatpush2.bf16.msra.mxu0 0
    %685 = vmatprep.subr.bf16.mxu0 0
    %686 = vmatpush2.bf16.msra.mxu0 0
    %687 = vmatprep.subr.bf16.mxu0 0
    %688 = vmatpush2.bf16.msra.mxu0 0
    %689 = vmatprep.subr.bf16.mxu0 0
    %690 = vmatpush2.bf16.msra.mxu0 0
    %691 = vmatprep.subr.bf16.mxu0 0
    %692 = vmatpush2.bf16.msra.mxu0 0
    %693 = vmatprep.subr.bf16.mxu0 0
    %694 = vmatpush2.bf16.msra.mxu0 0
    %695 = vmatprep.mubr.bf16.mxu0 0
    %696 = vmatmul.mubr.bf16.gmra.mxu0 %v661
    %v697 = vpop.f32.mrf.mxu0
    %v698 = vadd.f32 %v647, %v697
    %v699 = vpop.f32.mrf.mxu0
    %v700 = vpop.f32.mrf.mxu0
    %v701 = vadd.f32 %v647, %v700
    %v702 = vpop.f32.mrf.mxu0
    %703 = vdwg.mxu0
    %v704 = vadd.f32 %v205, %v698
    %v705 = vadd.f32 %v206, %v701
    %v706 = vsel %vm167, %v704, 0.0
    %707 = vadd.xlane.f32.xlu0 %v706
    %v708 = vpop.xlane.xlu0 %707
    %v709 = vsel %vm167, %v705, 0.0
    %710 = vadd.xlane.f32.xlu0 %v709
    %v711 = vpop.xlane.xlu0 %710
    %v712 = vmul.f32 %v708, %v174
    %v713 = vmul.f32 %v711, %v174
    %v714 = vsub.f32 %v704, %v712
    %v715 = vsub.f32 %v705, %v713
    %v716 = vmul.f32 %v714, %v714
    %v717 = vmul.f32 %v715, %v715
    %v718 = vsel %vm167, %v716, 0.0
    %719 = vadd.xlane.f32.xlu0 %v718
    %v720 = vpop.xlane.xlu0 %719
    %v721 = vsel %vm167, %v717, 0.0
    %722 = vadd.xlane.f32.xlu0 %v721
    %v723 = vpop.xlane.xlu0 %722
    %v724 = vmul.f32 %v720, %v174
    %v725 = vmul.f32 %v723, %v174
    %v726 = vadd.f32 %v724, 1e-12
    %v727 = vadd.f32 %v725, 1e-12
    %v728 = vrsqrt.pop %v726
    %v729 = vrsqrt.pop %v727
    %v730 = vmul.f32 %v714, %v728
    %v731 = vmul.f32 %v715, %v729
    %v732 = vlaneseq
    %v733 = vshrl.u32 %v732, 7
    %v734 = vsub.s32 1, %v733
    %v735 = vrot.slane %v638, %v734
    %v736 = vmul.f32 %v730, %v735
    %v737 = vmul.f32 %v731, %v735
    %v738 = vlaneseq
    %v739 = vshrl.u32 %v738, 7
    %v740 = vsub.s32 2, %v739
    %v741 = vrot.slane %v638, %v740
    %v742 = vadd.f32 %v736, %v741
    %v743 = vadd.f32 %v737, %v741
    %v744 = vpack.c.bf16 %v743, %v742
    %v745 = vld [vmem:[%s9] sm:$0xf]
    %v746 = vld [vmem:[%s9 + $0x4] sm:$0xf]
    %v747 = vld [vmem:[%s9 + $0x8] sm:$0xf]
    %v748 = vld [vmem:[%s9 + $0xc] sm:$0xf]
    %v749 = vld [vmem:[%s10] sm:$0x1]
    %v751 = vlaneseq
    %v752 = vshrl.u32 %v751, 7
    %v753 = vsub.s32 0, %v752
    %v754 = vrot.slane %v749, %v753
    %v760 = vunpack.c.l.b16 %v745
    %v761 = vunpack.c.l.b16 %v746
    %v762 = vunpack.c.l.b16 %v747
    %v763 = vunpack.c.l.b16 %v748
    %v764 = vpack.c.b16 %v761, %v760
    %v765 = vpack.c.b16 %v763, %v762
    %v769 = vsel %vm167, %v744, 0
    %771 = vmatprep.subr.bf16.mxu0 0
    %772 = vmatpush1.bf16.msra.mxu0 0
    %773 = vmatprep.subr.bf16.mxu0 0
    %774 = vmatpush1.bf16.msra.mxu0 0
    %775 = vmatprep.subr.bf16.mxu0 0
    %776 = vmatpush1.bf16.msra.mxu0 0
    %777 = vmatprep.subr.bf16.mxu0 0
    %778 = vmatpush1.bf16.msra.mxu0 0
    %779 = vmatprep.subr.bf16.mxu0 0
    %780 = vmatpush1.bf16.msra.mxu0 0
    %781 = vmatprep.subr.bf16.mxu0 0
    %782 = vmatpush1.bf16.msra.mxu0 0
    %783 = vmatprep.subr.bf16.mxu0 0
    %784 = vmatpush1.bf16.msra.mxu0 %v765
    %785 = vmatprep.subr.bf16.mxu0 0
    %786 = vmatpush1.bf16.msra.mxu0 %v764
    %787 = vmatprep.subr.bf16.mxu0 0
    %788 = vmatpush2.bf16.msra.mxu0 0
    %789 = vmatprep.subr.bf16.mxu0 0
    %790 = vmatpush2.bf16.msra.mxu0 0
    %791 = vmatprep.subr.bf16.mxu0 0
    %792 = vmatpush2.bf16.msra.mxu0 0
    %793 = vmatprep.subr.bf16.mxu0 0
    %794 = vmatpush2.bf16.msra.mxu0 0
    %795 = vmatprep.subr.bf16.mxu0 0
    %796 = vmatpush2.bf16.msra.mxu0 0
    %797 = vmatprep.subr.bf16.mxu0 0
    %798 = vmatpush2.bf16.msra.mxu0 0
    %799 = vmatprep.subr.bf16.mxu0 0
    %800 = vmatpush2.bf16.msra.mxu0 0
    %801 = vmatprep.subr.bf16.mxu0 0
    %802 = vmatpush2.bf16.msra.mxu0 0
    %803 = vmatprep.mubr.bf16.mxu0 0
    %804 = vmatmul.mubr.bf16.gmra.mxu0 %v769
    %v805 = vpop.f32.mrf.mxu0
    %v806 = vadd.f32 %v754, %v805
    %v807 = vpop.f32.mrf.mxu0
    %v808 = vpop.f32.mrf.mxu0
    %v809 = vadd.f32 %v754, %v808
    %v810 = vpop.f32.mrf.mxu0
    %811 = vdwg.mxu0
    %v812 = vmul.f32 %v806, %v806
    %v813 = vmul.f32 %v809, %v809
    %v814 = vmul.f32 %v806, %v812
    %v815 = vmul.f32 %v809, %v813
    %v816 = vmul.f32 %v814, 0.044715
    %v817 = vmul.f32 %v815, 0.044715
    %v818 = vadd.f32 %v806, %v816
    %v819 = vadd.f32 %v809, %v817
    %v820 = vmul.f32 %v818, 0.7978846
    %v821 = vmul.f32 %v819, 0.7978846
    %v822 = vtanh.pop %v820
    %v823 = vtanh.pop %v821
    %v824 = vadd.f32 %v822, 1.0
    %v825 = vadd.f32 %v823, 1.0
    %v826 = vmul.f32 %v824, 0.5
    %v827 = vmul.f32 %v825, 0.5
    %v828 = vmul.f32 %v806, %v826
    %v829 = vmul.f32 %v809, %v827
    %v830 = vpack.c.bf16 %v829, %v828
    %v831 = vld [vmem:[%s11] sm:$0xf]
    %v832 = vld [vmem:[%s11 + $0x4] sm:$0xf]
    %v833 = vld [vmem:[%s11 + $0x8] sm:$0xf]
    %v834 = vld [vmem:[%s11 + $0xc] sm:$0xf]
    %v835 = vld [vmem:[%s11 + $0x10] sm:$0xf]
    %v836 = vld [vmem:[%s11 + $0x14] sm:$0xf]
    %v837 = vld [vmem:[%s11 + $0x18] sm:$0xf]
    %v838 = vld [vmem:[%s11 + $0x1c] sm:$0xf]
    %v839 = vlaneseq
    %v840 = vshrl.u32 %v839, 7
    %v841 = vsub.s32 3, %v840
    %v842 = vrot.slane %v638, %v841
    %v851 = vunpack.c.l.b16 %v831
    %v852 = vunpack.c.l.b16 %v832
    %v853 = vunpack.c.l.b16 %v833
    %v854 = vunpack.c.l.b16 %v834
    %v855 = vunpack.c.l.b16 %v835
    %v856 = vunpack.c.l.b16 %v836
    %v857 = vunpack.c.l.b16 %v837
    %v858 = vunpack.c.l.b16 %v838
    %v859 = vpack.c.b16 %v852, %v851
    %v860 = vpack.c.b16 %v854, %v853
    %v861 = vpack.c.b16 %v856, %v855
    %v862 = vpack.c.b16 %v858, %v857
    %v868 = vsel %vm424, %v830, 0
    %870 = vmatprep.subr.bf16.mxu0 0
    %871 = vmatpush1.bf16.msra.mxu0 0
    %872 = vmatprep.subr.bf16.mxu0 0
    %873 = vmatpush1.bf16.msra.mxu0 0
    %874 = vmatprep.subr.bf16.mxu0 0
    %875 = vmatpush1.bf16.msra.mxu0 0
    %876 = vmatprep.subr.bf16.mxu0 0
    %877 = vmatpush1.bf16.msra.mxu0 0
    %878 = vmatprep.subr.bf16.mxu0 0
    %879 = vmatpush1.bf16.msra.mxu0 %v862
    %880 = vmatprep.subr.bf16.mxu0 0
    %881 = vmatpush1.bf16.msra.mxu0 %v861
    %882 = vmatprep.subr.bf16.mxu0 0
    %883 = vmatpush1.bf16.msra.mxu0 %v860
    %884 = vmatprep.subr.bf16.mxu0 0
    %885 = vmatpush1.bf16.msra.mxu0 %v859
    %886 = vmatprep.subr.bf16.mxu0 0
    %887 = vmatpush2.bf16.msra.mxu0 0
    %888 = vmatprep.subr.bf16.mxu0 0
    %889 = vmatpush2.bf16.msra.mxu0 0
    %890 = vmatprep.subr.bf16.mxu0 0
    %891 = vmatpush2.bf16.msra.mxu0 0
    %892 = vmatprep.subr.bf16.mxu0 0
    %893 = vmatpush2.bf16.msra.mxu0 0
    %894 = vmatprep.subr.bf16.mxu0 0
    %895 = vmatpush2.bf16.msra.mxu0 0
    %896 = vmatprep.subr.bf16.mxu0 0
    %897 = vmatpush2.bf16.msra.mxu0 0
    %898 = vmatprep.subr.bf16.mxu0 0
    %899 = vmatpush2.bf16.msra.mxu0 0
    %900 = vmatprep.subr.bf16.mxu0 0
    %901 = vmatpush2.bf16.msra.mxu0 0
    %902 = vmatprep.mubr.bf16.mxu0 0
    %903 = vmatmul.mubr.bf16.gmra.mxu0 %v868
    %v904 = vpop.f32.mrf.mxu0
    %v905 = vadd.f32 %v842, %v904
    %v906 = vpop.f32.mrf.mxu0
    %v907 = vpop.f32.mrf.mxu0
    %v908 = vadd.f32 %v842, %v907
    %v909 = vpop.f32.mrf.mxu0
    %910 = vdwg.mxu0
    %v911 = vadd.f32 %v742, %v905
    %v912 = vadd.f32 %v743, %v908
    %v913 = vsel %vm167, %v911, 0.0
    %914 = vadd.xlane.f32.xlu0 %v913
    %v915 = vpop.xlane.xlu0 %914
    %v916 = vsel %vm167, %v912, 0.0
    %917 = vadd.xlane.f32.xlu0 %v916
    %v918 = vpop.xlane.xlu0 %917
    %v919 = vmul.f32 %v915, %v174
    %v920 = vmul.f32 %v918, %v174
    %v921 = vsub.f32 %v911, %v919
    %v922 = vsub.f32 %v912, %v920
    %v923 = vmul.f32 %v921, %v921
    %v924 = vmul.f32 %v922, %v922
    %v925 = vsel %vm167, %v923, 0.0
    %926 = vadd.xlane.f32.xlu0 %v925
    %v927 = vpop.xlane.xlu0 %926
    %v928 = vsel %vm167, %v924, 0.0
    %929 = vadd.xlane.f32.xlu0 %v928
    %v930 = vpop.xlane.xlu0 %929
    %v931 = vmul.f32 %v927, %v174
    %v932 = vmul.f32 %v930, %v174
    %v933 = vadd.f32 %v931, 1e-12
    %v934 = vadd.f32 %v932, 1e-12
    %v935 = vrsqrt.pop %v933
    %v936 = vrsqrt.pop %v934
    %v937 = vmul.f32 %v921, %v935
    %v938 = vmul.f32 %v922, %v936
    %v939 = vlaneseq
    %v940 = vshrl.u32 %v939, 7
    %v941 = vsub.s32 4, %v940
    %v942 = vrot.slane %v638, %v941
    %v943 = vmul.f32 %v937, %v942
    %v944 = vmul.f32 %v938, %v942
    %v945 = vlaneseq
    %v946 = vshrl.u32 %v945, 7
    %v947 = vsub.s32 5, %v946
    %v948 = vrot.slane %v638, %v947
    %v949 = vadd.f32 %v943, %v948
    %v950 = vadd.f32 %v944, %v948
    %v951 = vpack.c.bf16 %v950, %v949
    %s952 = scalar_lea.vmem %s6, 16
    %v953 = vld [vmem:[%s952] sm:$0xf]
    %v954 = vld [vmem:[%s952 + $0x4] sm:$0xf]
    %v955 = vld [vmem:[%s952 + $0x8] sm:$0xf]
    %v956 = vld [vmem:[%s952 + $0xc] sm:$0xf]
    %s957 = scalar_lea.vmem %s7, 1
    %v958 = vld [vmem:[%s957] sm:$0x1]
    %v960 = vlaneseq
    %v961 = vshrl.u32 %v960, 7
    %v962 = vsub.s32 0, %v961
    %v963 = vrot.slane %v958, %v962
    %v969 = vunpack.c.l.b16 %v953
    %v970 = vunpack.c.l.b16 %v954
    %v971 = vunpack.c.l.b16 %v955
    %v972 = vunpack.c.l.b16 %v956
    %v973 = vpack.c.b16 %v970, %v969
    %v974 = vpack.c.b16 %v972, %v971
    %v978 = vsel %vm167, %v951, 0
    %980 = vmatprep.subr.bf16.mxu0 0
    %981 = vmatpush1.bf16.msra.mxu0 0
    %982 = vmatprep.subr.bf16.mxu0 0
    %983 = vmatpush1.bf16.msra.mxu0 0
    %984 = vmatprep.subr.bf16.mxu0 0
    %985 = vmatpush1.bf16.msra.mxu0 0
    %986 = vmatprep.subr.bf16.mxu0 0
    %987 = vmatpush1.bf16.msra.mxu0 0
    %988 = vmatprep.subr.bf16.mxu0 0
    %989 = vmatpush1.bf16.msra.mxu0 0
    %990 = vmatprep.subr.bf16.mxu0 0
    %991 = vmatpush1.bf16.msra.mxu0 0
    %992 = vmatprep.subr.bf16.mxu0 0
    %993 = vmatpush1.bf16.msra.mxu0 %v974
    %994 = vmatprep.subr.bf16.mxu0 0
    %995 = vmatpush1.bf16.msra.mxu0 %v973
    %996 = vmatprep.subr.bf16.mxu0 0
    %997 = vmatpush2.bf16.msra.mxu0 0
    %998 = vmatprep.subr.bf16.mxu0 0
    %999 = vmatpush2.bf16.msra.mxu0 0
    %1000 = vmatprep.subr.bf16.mxu0 0
    %1001 = vmatpush2.bf16.msra.mxu0 0
    %1002 = vmatprep.subr.bf16.mxu0 0
    %1003 = vmatpush2.bf16.msra.mxu0 0
    %1004 = vmatprep.subr.bf16.mxu0 0
    %1005 = vmatpush2.bf16.msra.mxu0 0
    %1006 = vmatprep.subr.bf16.mxu0 0
    %1007 = vmatpush2.bf16.msra.mxu0 0
    %1008 = vmatprep.subr.bf16.mxu0 0
    %1009 = vmatpush2.bf16.msra.mxu0 0
    %1010 = vmatprep.subr.bf16.mxu0 0
    %1011 = vmatpush2.bf16.msra.mxu0 0
    %1012 = vmatprep.mubr.bf16.mxu0 0
    %1013 = vmatmul.mubr.bf16.gmra.mxu0 %v978
    %v1014 = vpop.f32.mrf.mxu0
    %v1015 = vadd.f32 %v963, %v1014
    %v1016 = vpop.f32.mrf.mxu0
    %v1017 = vpop.f32.mrf.mxu0
    %v1018 = vadd.f32 %v963, %v1017
    %v1019 = vpop.f32.mrf.mxu0
    %1020 = vdwg.mxu0
    %1023 = vrot.lane.b32.xlu0 %v1015, 120
    %v1024 = vpop.permute.xlu0 %1023
    %1025 = vrot.lane.b32.xlu0 %v1018, 120
    %v1026 = vpop.permute.xlu0 %1025
    %1029 = vrot.lane.b32.xlu0 %v1015, 112
    %v1030 = vpop.permute.xlu0 %1029
    %1031 = vrot.lane.b32.xlu0 %v1018, 112
    %v1032 = vpop.permute.xlu0 %1031
    %1035 = vrot.lane.b32.xlu0 %v1015, 104
    %v1036 = vpop.permute.xlu0 %1035
    %1037 = vrot.lane.b32.xlu0 %v1018, 104
    %v1038 = vpop.permute.xlu0 %1037
    %v1041 = vpack.c.bf16 %v1018, %v1015
    %v1042 = vpack.c.bf16 %v1026, %v1024
    %v1043 = vpack.c.bf16 %v1032, %v1030
    %v1044 = vpack.c.bf16 %v1038, %v1036
    %1049 = vrot.lane.b32.xlu0 %v1041, 96
    %v1050 = vpop.permute.xlu0 %1049
    %1051 = vrot.lane.b32.xlu0 %v1042, 96
    %v1052 = vpop.permute.xlu0 %1051
    %1053 = vrot.lane.b32.xlu0 %v1043, 96
    %v1054 = vpop.permute.xlu0 %1053
    %1055 = vrot.lane.b32.xlu0 %v1044, 96
    %v1056 = vpop.permute.xlu0 %1055
    %v1058 = vsel %vm334, %v1041, 0
    %v1061 = vsel %vm334, %v1042, 0
    %v1064 = vsel %vm334, %v1043, 0
    %v1067 = vsel %vm334, %v1044, 0
    %v1070 = vsel %vm334, %v1050, 0
    %v1073 = vsel %vm334, %v1052, 0
    %v1076 = vsel %vm334, %v1054, 0
    %v1079 = vsel %vm334, %v1056, 0
    %1081 = vmatprep.subr.bf16.mxu0 0
    %1082 = vmatpush1.bf16.xpose.msra.mxu0 0
    %1083 = vmatprep.subr.bf16.mxu0 0
    %1084 = vmatpush1.bf16.xpose.msra.mxu0 0
    %1085 = vmatprep.subr.bf16.mxu0 0
    %1086 = vmatpush1.bf16.xpose.msra.mxu0 0
    %1087 = vmatprep.subr.bf16.mxu0 0
    %1088 = vmatpush1.bf16.xpose.msra.mxu0 0
    %1089 = vmatprep.subr.bf16.mxu0 0
    %1090 = vmatpush1.bf16.xpose.msra.mxu0 %v1079
    %1091 = vmatprep.subr.bf16.mxu0 0
    %1092 = vmatpush1.bf16.xpose.msra.mxu0 %v1076
    %1093 = vmatprep.subr.bf16.mxu0 0
    %1094 = vmatpush1.bf16.xpose.msra.mxu0 %v1073
    %1095 = vmatprep.subr.bf16.mxu0 0
    %1096 = vmatpush1.bf16.xpose.msra.mxu0 %v1070
    %1097 = vmatprep.subr.bf16.mxu0 0
    %1098 = vmatpush2.bf16.xpose.msra.mxu0 0
    %1099 = vmatprep.subr.bf16.mxu0 0
    %1100 = vmatpush2.bf16.xpose.msra.mxu0 0
    %1101 = vmatprep.subr.bf16.mxu0 0
    %1102 = vmatpush2.bf16.xpose.msra.mxu0 0
    %1103 = vmatprep.subr.bf16.mxu0 0
    %1104 = vmatpush2.bf16.xpose.msra.mxu0 0
    %1105 = vmatprep.subr.bf16.mxu0 0
    %1106 = vmatpush2.bf16.xpose.msra.mxu0 0
    %1107 = vmatprep.subr.bf16.mxu0 0
    %1108 = vmatpush2.bf16.xpose.msra.mxu0 0
    %1109 = vmatprep.subr.bf16.mxu0 0
    %1110 = vmatpush2.bf16.xpose.msra.mxu0 0
    %1111 = vmatprep.subr.bf16.mxu0 0
    %1112 = vmatpush2.bf16.xpose.msra.mxu0 0
    %1113 = vmatprep.mubr.bf16.mxu0 0
    %1114 = vmatmul.mubr.bf16.gmra.mxu0 %v1058
    %v1115 = vpop.f32.mrf.mxu0
    %v1116 = vadd.f32 %v222, %v1115
    %v1117 = vpop.f32.mrf.mxu0
    %v1118 = vpop.f32.mrf.mxu0
    %v1119 = vadd.f32 %v223, %v1118
    %v1120 = vpop.f32.mrf.mxu0
    %1121 = vmatprep.mubr.bf16.mxu0 0
    %1122 = vmatmul.mubr.bf16.gmra.mxu0 %v1061
    %v1123 = vpop.f32.mrf.mxu0
    %v1124 = vadd.f32 %v224, %v1123
    %v1125 = vpop.f32.mrf.mxu0
    %v1126 = vpop.f32.mrf.mxu0
    %v1127 = vadd.f32 %v225, %v1126
    %v1128 = vpop.f32.mrf.mxu0
    %1129 = vmatprep.mubr.bf16.mxu0 0
    %1130 = vmatmul.mubr.bf16.gmra.mxu0 %v1064
    %v1131 = vpop.f32.mrf.mxu0
    %v1132 = vadd.f32 %v226, %v1131
    %v1133 = vpop.f32.mrf.mxu0
    %v1134 = vpop.f32.mrf.mxu0
    %v1135 = vadd.f32 %v227, %v1134
    %v1136 = vpop.f32.mrf.mxu0
    %1137 = vmatprep.mubr.bf16.mxu0 0
    %1138 = vmatmul.mubr.bf16.gmra.mxu0 %v1067
    %v1139 = vpop.f32.mrf.mxu0
    %v1140 = vadd.f32 %v228, %v1139
    %v1141 = vpop.f32.mrf.mxu0
    %v1142 = vpop.f32.mrf.mxu0
    %v1143 = vadd.f32 %v229, %v1142
    %v1144 = vpop.f32.mrf.mxu0
    %1145 = vdwg.mxu0
    %v1146 = vsel %vm424, %v1116, -inf
    %1147 = vmax.xlane.f32.xlu0 %v1146
    %v1148 = vpop.xlane.xlu0 %1147
    %v1149 = vsel %vm424, %v1119, -inf
    %1150 = vmax.xlane.f32.xlu0 %v1149
    %v1151 = vpop.xlane.xlu0 %1150
    %v1152 = vsel %vm424, %v1124, -inf
    %1153 = vmax.xlane.f32.xlu0 %v1152
    %v1154 = vpop.xlane.xlu0 %1153
    %v1155 = vsel %vm424, %v1127, -inf
    %1156 = vmax.xlane.f32.xlu0 %v1155
    %v1157 = vpop.xlane.xlu0 %1156
    %v1158 = vsel %vm424, %v1132, -inf
    %1159 = vmax.xlane.f32.xlu0 %v1158
    %v1160 = vpop.xlane.xlu0 %1159
    %v1161 = vsel %vm424, %v1135, -inf
    %1162 = vmax.xlane.f32.xlu0 %v1161
    %v1163 = vpop.xlane.xlu0 %1162
    %v1164 = vsel %vm424, %v1140, -inf
    %1165 = vmax.xlane.f32.xlu0 %v1164
    %v1166 = vpop.xlane.xlu0 %1165
    %v1167 = vsel %vm424, %v1143, -inf
    %1168 = vmax.xlane.f32.xlu0 %v1167
    %v1169 = vpop.xlane.xlu0 %1168
    %v1170 = vsub.f32 %v1116, %v1148
    %v1171 = vsub.f32 %v1119, %v1151
    %v1172 = vsub.f32 %v1124, %v1154
    %v1173 = vsub.f32 %v1127, %v1157
    %v1174 = vsub.f32 %v1132, %v1160
    %v1175 = vsub.f32 %v1135, %v1163
    %v1176 = vsub.f32 %v1140, %v1166
    %v1177 = vsub.f32 %v1143, %v1169
    %v1178 = vmul.f32 %v1170, 1.442695
    %v1179 = vpow.pop %v1178
    %v1180 = vmul.f32 %v1171, 1.442695
    %v1181 = vpow.pop %v1180
    %v1182 = vmul.f32 %v1172, 1.442695
    %v1183 = vpow.pop %v1182
    %v1184 = vmul.f32 %v1173, 1.442695
    %v1185 = vpow.pop %v1184
    %v1186 = vmul.f32 %v1174, 1.442695
    %v1187 = vpow.pop %v1186
    %v1188 = vmul.f32 %v1175, 1.442695
    %v1189 = vpow.pop %v1188
    %v1190 = vmul.f32 %v1176, 1.442695
    %v1191 = vpow.pop %v1190
    %v1192 = vmul.f32 %v1177, 1.442695
    %v1193 = vpow.pop %v1192
    %v1194 = vsel %vm424, %v1179, 0.0
    %1195 = vadd.xlane.f32.xlu0 %v1194
    %v1196 = vpop.xlane.xlu0 %1195
    %v1197 = vsel %vm424, %v1181, 0.0
    %1198 = vadd.xlane.f32.xlu0 %v1197
    %v1199 = vpop.xlane.xlu0 %1198
    %v1200 = vsel %vm424, %v1183, 0.0
    %1201 = vadd.xlane.f32.xlu0 %v1200
    %v1202 = vpop.xlane.xlu0 %1201
    %v1203 = vsel %vm424, %v1185, 0.0
    %1204 = vadd.xlane.f32.xlu0 %v1203
    %v1205 = vpop.xlane.xlu0 %1204
    %v1206 = vsel %vm424, %v1187, 0.0
    %1207 = vadd.xlane.f32.xlu0 %v1206
    %v1208 = vpop.xlane.xlu0 %1207
    %v1209 = vsel %vm424, %v1189, 0.0
    %1210 = vadd.xlane.f32.xlu0 %v1209
    %v1211 = vpop.xlane.xlu0 %1210
    %v1212 = vsel %vm424, %v1191, 0.0
    %1213 = vadd.xlane.f32.xlu0 %v1212
    %v1214 = vpop.xlane.xlu0 %1213
    %v1215 = vsel %vm424, %v1193, 0.0
    %1216 = vadd.xlane.f32.xlu0 %v1215
    %v1217 = vpop.xlane.xlu0 %1216
    %v1218 = vrcp.pop %v1196
    %v1219 = vrcp.pop %v1199
    %v1220 = vrcp.pop %v1202
    %v1221 = vrcp.pop %v1205
    %v1222 = vrcp.pop %v1208
    %v1223 = vrcp.pop %v1211
    %v1224 = vrcp.pop %v1214
    %v1225 = vrcp.pop %v1217
    %v1226 = vmul.f32 %v1179, %v1218
    %v1227 = vmul.f32 %v1181, %v1219
    %v1228 = vmul.f32 %v1183, %v1220
    %v1229 = vmul.f32 %v1185, %v1221
    %v1230 = vmul.f32 %v1187, %v1222
    %v1231 = vmul.f32 %v1189, %v1223
    %v1232 = vmul.f32 %v1191, %v1224
    %v1233 = vmul.f32 %v1193, %v1225
    %v1234 = vpack.c.bf16 %v1227, %v1226
    %v1235 = vpack.c.bf16 %v1229, %v1228
    %v1236 = vpack.c.bf16 %v1231, %v1230
    %v1237 = vpack.c.bf16 %v1233, %v1232
    %1238 = vrot.lane.b32.xlu0 %v1041, 64
    %v1239 = vpop.permute.xlu0 %1238
    %1240 = vrot.lane.b32.xlu0 %v1042, 64
    %v1241 = vpop.permute.xlu0 %1240
    %1242 = vrot.lane.b32.xlu0 %v1043, 64
    %v1243 = vpop.permute.xlu0 %1242
    %1244 = vrot.lane.b32.xlu0 %v1044, 64
    %v1245 = vpop.permute.xlu0 %1244
    %v1251 = vsel %vm424, %v1234, 0
    %v1254 = vsel %vm424, %v1235, 0
    %v1257 = vsel %vm424, %v1236, 0
    %v1260 = vsel %vm424, %v1237, 0
    %1262 = vmatprep.subr.bf16.mxu0 0
    %1263 = vmatpush1.bf16.msra.mxu0 0
    %1264 = vmatprep.subr.bf16.mxu0 0
    %1265 = vmatpush1.bf16.msra.mxu0 0
    %1266 = vmatprep.subr.bf16.mxu0 0
    %1267 = vmatpush1.bf16.msra.mxu0 0
    %1268 = vmatprep.subr.bf16.mxu0 0
    %1269 = vmatpush1.bf16.msra.mxu0 0
    %1270 = vmatprep.subr.bf16.mxu0 0
    %1271 = vmatpush1.bf16.msra.mxu0 %v1245
    %1272 = vmatprep.subr.bf16.mxu0 0
    %1273 = vmatpush1.bf16.msra.mxu0 %v1243
    %1274 = vmatprep.subr.bf16.mxu0 0
    %1275 = vmatpush1.bf16.msra.mxu0 %v1241
    %1276 = vmatprep.subr.bf16.mxu0 0
    %1277 = vmatpush1.bf16.msra.mxu0 %v1239
    %1278 = vmatprep.subr.bf16.mxu0 0
    %1279 = vmatpush2.bf16.msra.mxu0 0
    %1280 = vmatprep.subr.bf16.mxu0 0
    %1281 = vmatpush2.bf16.msra.mxu0 0
    %1282 = vmatprep.subr.bf16.mxu0 0
    %1283 = vmatpush2.bf16.msra.mxu0 0
    %1284 = vmatprep.subr.bf16.mxu0 0
    %1285 = vmatpush2.bf16.msra.mxu0 0
    %1286 = vmatprep.subr.bf16.mxu0 0
    %1287 = vmatpush2.bf16.msra.mxu0 0
    %1288 = vmatprep.subr.bf16.mxu0 0
    %1289 = vmatpush2.bf16.msra.mxu0 0
    %1290 = vmatprep.subr.bf16.mxu0 0
    %1291 = vmatpush2.bf16.msra.mxu0 0
    %1292 = vmatprep.subr.bf16.mxu0 0
    %1293 = vmatpush2.bf16.msra.mxu0 0
    %1294 = vmatprep.mubr.bf16.mxu0 0
    %1295 = vmatmul.mubr.bf16.gmra.mxu0 %v1251
    %v1296 = vpop.f32.mrf.mxu0
    %v1297 = vadd.f32 0.0, %v1296
    %v1298 = vpop.f32.mrf.mxu0
    %v1299 = vpop.f32.mrf.mxu0
    %v1300 = vadd.f32 0.0, %v1299
    %v1301 = vpop.f32.mrf.mxu0
    %1302 = vmatprep.mubr.bf16.mxu0 0
    %1303 = vmatmul.mubr.bf16.gmra.mxu0 %v1254
    %v1304 = vpop.f32.mrf.mxu0
    %v1305 = vadd.f32 0.0, %v1304
    %v1306 = vpop.f32.mrf.mxu0
    %v1307 = vpop.f32.mrf.mxu0
    %v1308 = vadd.f32 0.0, %v1307
    %v1309 = vpop.f32.mrf.mxu0
    %1310 = vmatprep.mubr.bf16.mxu0 0
    %1311 = vmatmul.mubr.bf16.gmra.mxu0 %v1257
    %v1312 = vpop.f32.mrf.mxu0
    %v1313 = vadd.f32 0.0, %v1312
    %v1314 = vpop.f32.mrf.mxu0
    %v1315 = vpop.f32.mrf.mxu0
    %v1316 = vadd.f32 0.0, %v1315
    %v1317 = vpop.f32.mrf.mxu0
    %1318 = vmatprep.mubr.bf16.mxu0 0
    %1319 = vmatmul.mubr.bf16.gmra.mxu0 %v1260
    %v1320 = vpop.f32.mrf.mxu0
    %v1321 = vadd.f32 0.0, %v1320
    %v1322 = vpop.f32.mrf.mxu0
    %v1323 = vpop.f32.mrf.mxu0
    %v1324 = vadd.f32 0.0, %v1323
    %v1325 = vpop.f32.mrf.mxu0
    %1326 = vdwg.mxu0
    %1329 = vrot.lane.b32.xlu0 %v1305, 8
    %v1330 = vpop.permute.xlu0 %1329
    %1331 = vrot.lane.b32.xlu0 %v1308, 8
    %v1332 = vpop.permute.xlu0 %1331
    %1337 = vrot.lane.b32.xlu0 %v1313, 16
    %v1338 = vpop.permute.xlu0 %1337
    %1339 = vrot.lane.b32.xlu0 %v1316, 16
    %v1340 = vpop.permute.xlu0 %1339
    %1345 = vrot.lane.b32.xlu0 %v1321, 24
    %v1346 = vpop.permute.xlu0 %1345
    %1347 = vrot.lane.b32.xlu0 %v1324, 24
    %v1348 = vpop.permute.xlu0 %1347
    %v1351 = vsel %vm334, %v1297, %v1330
    %v1352 = vsel %vm334, %v1300, %v1332
    %v1353 = vsel %vm632, %v1351, %v1338
    %v1354 = vsel %vm632, %v1352, %v1340
    %v1355 = vsel %vm635, %v1353, %v1346
    %v1356 = vsel %vm635, %v1354, %v1348
    %s1357 = scalar_lea.vmem %s12, 8
    %v1358 = vld [vmem:[%s1357] sm:$0x3f]
    %v1359 = vpack.c.bf16 %v1356, %v1355
    %s1360 = scalar_lea.vmem %s8, 16
    %v1361 = vld [vmem:[%s1360] sm:$0xf]
    %v1362 = vld [vmem:[%s1360 + $0x4] sm:$0xf]
    %v1363 = vld [vmem:[%s1360 + $0x8] sm:$0xf]
    %v1364 = vld [vmem:[%s1360 + $0xc] sm:$0xf]
    %v1365 = vlaneseq
    %v1366 = vshrl.u32 %v1365, 7
    %v1367 = vsub.s32 0, %v1366
    %v1368 = vrot.slane %v1358, %v1367
    %v1373 = vunpack.c.l.b16 %v1361
    %v1374 = vunpack.c.l.b16 %v1362
    %v1375 = vunpack.c.l.b16 %v1363
    %v1376 = vunpack.c.l.b16 %v1364
    %v1377 = vpack.c.b16 %v1374, %v1373
    %v1378 = vpack.c.b16 %v1376, %v1375
    %v1382 = vsel %vm167, %v1359, 0
    %1384 = vmatprep.subr.bf16.mxu0 0
    %1385 = vmatpush1.bf16.msra.mxu0 0
    %1386 = vmatprep.subr.bf16.mxu0 0
    %1387 = vmatpush1.bf16.msra.mxu0 0
    %1388 = vmatprep.subr.bf16.mxu0 0
    %1389 = vmatpush1.bf16.msra.mxu0 0
    %1390 = vmatprep.subr.bf16.mxu0 0
    %1391 = vmatpush1.bf16.msra.mxu0 0
    %1392 = vmatprep.subr.bf16.mxu0 0
    %1393 = vmatpush1.bf16.msra.mxu0 0
    %1394 = vmatprep.subr.bf16.mxu0 0
    %1395 = vmatpush1.bf16.msra.mxu0 0
    %1396 = vmatprep.subr.bf16.mxu0 0
    %1397 = vmatpush1.bf16.msra.mxu0 %v1378
    %1398 = vmatprep.subr.bf16.mxu0 0
    %1399 = vmatpush1.bf16.msra.mxu0 %v1377
    %1400 = vmatprep.subr.bf16.mxu0 0
    %1401 = vmatpush2.bf16.msra.mxu0 0
    %1402 = vmatprep.subr.bf16.mxu0 0
    %1403 = vmatpush2.bf16.msra.mxu0 0
    %1404 = vmatprep.subr.bf16.mxu0 0
    %1405 = vmatpush2.bf16.msra.mxu0 0
    %1406 = vmatprep.subr.bf16.mxu0 0
    %1407 = vmatpush2.bf16.msra.mxu0 0
    %1408 = vmatprep.subr.bf16.mxu0 0
    %1409 = vmatpush2.bf16.msra.mxu0 0
    %1410 = vmatprep.subr.bf16.mxu0 0
    %1411 = vmatpush2.bf16.msra.mxu0 0
    %1412 = vmatprep.subr.bf16.mxu0 0
    %1413 = vmatpush2.bf16.msra.mxu0 0
    %1414 = vmatprep.subr.bf16.mxu0 0
    %1415 = vmatpush2.bf16.msra.mxu0 0
    %1416 = vmatprep.mubr.bf16.mxu0 0
    %1417 = vmatmul.mubr.bf16.gmra.mxu0 %v1382
    %v1418 = vpop.f32.mrf.mxu0
    %v1419 = vadd.f32 %v1368, %v1418
    %v1420 = vpop.f32.mrf.mxu0
    %v1421 = vpop.f32.mrf.mxu0
    %v1422 = vadd.f32 %v1368, %v1421
    %v1423 = vpop.f32.mrf.mxu0
    %1424 = vdwg.mxu0
    %v1425 = vadd.f32 %v949, %v1419
    %v1426 = vadd.f32 %v950, %v1422
    %v1427 = vsel %vm167, %v1425, 0.0
    %1428 = vadd.xlane.f32.xlu0 %v1427
    %v1429 = vpop.xlane.xlu0 %1428
    %v1430 = vsel %vm167, %v1426, 0.0
    %1431 = vadd.xlane.f32.xlu0 %v1430
    %v1432 = vpop.xlane.xlu0 %1431
    %v1433 = vmul.f32 %v1429, %v174
    %v1434 = vmul.f32 %v1432, %v174
    %v1435 = vsub.f32 %v1425, %v1433
    %v1436 = vsub.f32 %v1426, %v1434
    %v1437 = vmul.f32 %v1435, %v1435
    %v1438 = vmul.f32 %v1436, %v1436
    %v1439 = vsel %vm167, %v1437, 0.0
    %1440 = vadd.xlane.f32.xlu0 %v1439
    %v1441 = vpop.xlane.xlu0 %1440
    %v1442 = vsel %vm167, %v1438, 0.0
    %1443 = vadd.xlane.f32.xlu0 %v1442
    %v1444 = vpop.xlane.xlu0 %1443
    %v1445 = vmul.f32 %v1441, %v174
    %v1446 = vmul.f32 %v1444, %v174
    %v1447 = vadd.f32 %v1445, 1e-12
    %v1448 = vadd.f32 %v1446, 1e-12
    %v1449 = vrsqrt.pop %v1447
    %v1450 = vrsqrt.pop %v1448
    %v1451 = vmul.f32 %v1435, %v1449
    %v1452 = vmul.f32 %v1436, %v1450
    %v1453 = vlaneseq
    %v1454 = vshrl.u32 %v1453, 7
    %v1455 = vsub.s32 1, %v1454
    %v1456 = vrot.slane %v1358, %v1455
    %v1457 = vmul.f32 %v1451, %v1456
    %v1458 = vmul.f32 %v1452, %v1456
    %v1459 = vlaneseq
    %v1460 = vshrl.u32 %v1459, 7
    %v1461 = vsub.s32 2, %v1460
    %v1462 = vrot.slane %v1358, %v1461
    %v1463 = vadd.f32 %v1457, %v1462
    %v1464 = vadd.f32 %v1458, %v1462
    %v1465 = vpack.c.bf16 %v1464, %v1463
    %s1466 = scalar_lea.vmem %s9, 16
    %v1467 = vld [vmem:[%s1466] sm:$0xf]
    %v1468 = vld [vmem:[%s1466 + $0x4] sm:$0xf]
    %v1469 = vld [vmem:[%s1466 + $0x8] sm:$0xf]
    %v1470 = vld [vmem:[%s1466 + $0xc] sm:$0xf]
    %s1471 = scalar_lea.vmem %s10, 1
    %v1472 = vld [vmem:[%s1471] sm:$0x1]
    %v1474 = vlaneseq
    %v1475 = vshrl.u32 %v1474, 7
    %v1476 = vsub.s32 0, %v1475
    %v1477 = vrot.slane %v1472, %v1476
    %v1483 = vunpack.c.l.b16 %v1467
    %v1484 = vunpack.c.l.b16 %v1468
    %v1485 = vunpack.c.l.b16 %v1469
    %v1486 = vunpack.c.l.b16 %v1470
    %v1487 = vpack.c.b16 %v1484, %v1483
    %v1488 = vpack.c.b16 %v1486, %v1485
    %v1492 = vsel %vm167, %v1465, 0
    %1494 = vmatprep.subr.bf16.mxu0 0
    %1495 = vmatpush1.bf16.msra.mxu0 0
    %1496 = vmatprep.subr.bf16.mxu0 0
    %1497 = vmatpush1.bf16.msra.mxu0 0
    %1498 = vmatprep.subr.bf16.mxu0 0
    %1499 = vmatpush1.bf16.msra.mxu0 0
    %1500 = vmatprep.subr.bf16.mxu0 0
    %1501 = vmatpush1.bf16.msra.mxu0 0
    %1502 = vmatprep.subr.bf16.mxu0 0
    %1503 = vmatpush1.bf16.msra.mxu0 0
    %1504 = vmatprep.subr.bf16.mxu0 0
    %1505 = vmatpush1.bf16.msra.mxu0 0
    %1506 = vmatprep.subr.bf16.mxu0 0
    %1507 = vmatpush1.bf16.msra.mxu0 %v1488
    %1508 = vmatprep.subr.bf16.mxu0 0
    %1509 = vmatpush1.bf16.msra.mxu0 %v1487
    %1510 = vmatprep.subr.bf16.mxu0 0
    %1511 = vmatpush2.bf16.msra.mxu0 0
    %1512 = vmatprep.subr.bf16.mxu0 0
    %1513 = vmatpush2.bf16.msra.mxu0 0
    %1514 = vmatprep.subr.bf16.mxu0 0
    %1515 = vmatpush2.bf16.msra.mxu0 0
    %1516 = vmatprep.subr.bf16.mxu0 0
    %1517 = vmatpush2.bf16.msra.mxu0 0
    %1518 = vmatprep.subr.bf16.mxu0 0
    %1519 = vmatpush2.bf16.msra.mxu0 0
    %1520 = vmatprep.subr.bf16.mxu0 0
    %1521 = vmatpush2.bf16.msra.mxu0 0
    %1522 = vmatprep.subr.bf16.mxu0 0
    %1523 = vmatpush2.bf16.msra.mxu0 0
    %1524 = vmatprep.subr.bf16.mxu0 0
    %1525 = vmatpush2.bf16.msra.mxu0 0
    %1526 = vmatprep.mubr.bf16.mxu0 0
    %1527 = vmatmul.mubr.bf16.gmra.mxu0 %v1492
    %v1528 = vpop.f32.mrf.mxu0
    %v1529 = vadd.f32 %v1477, %v1528
    %v1530 = vpop.f32.mrf.mxu0
    %v1531 = vpop.f32.mrf.mxu0
    %v1532 = vadd.f32 %v1477, %v1531
    %v1533 = vpop.f32.mrf.mxu0
    %1534 = vdwg.mxu0
    %v1535 = vmul.f32 %v1529, %v1529
    %v1536 = vmul.f32 %v1532, %v1532
    %v1537 = vmul.f32 %v1529, %v1535
    %v1538 = vmul.f32 %v1532, %v1536
    %v1539 = vmul.f32 %v1537, 0.044715
    %v1540 = vmul.f32 %v1538, 0.044715
    %v1541 = vadd.f32 %v1529, %v1539
    %v1542 = vadd.f32 %v1532, %v1540
    %v1543 = vmul.f32 %v1541, 0.7978846
    %v1544 = vmul.f32 %v1542, 0.7978846
    %v1545 = vtanh.pop %v1543
    %v1546 = vtanh.pop %v1544
    %v1547 = vadd.f32 %v1545, 1.0
    %v1548 = vadd.f32 %v1546, 1.0
    %v1549 = vmul.f32 %v1547, 0.5
    %v1550 = vmul.f32 %v1548, 0.5
    %v1551 = vmul.f32 %v1529, %v1549
    %v1552 = vmul.f32 %v1532, %v1550
    %v1553 = vpack.c.bf16 %v1552, %v1551
    %s1554 = scalar_lea.vmem %s11, 32
    %v1555 = vld [vmem:[%s1554] sm:$0xf]
    %v1556 = vld [vmem:[%s1554 + $0x4] sm:$0xf]
    %v1557 = vld [vmem:[%s1554 + $0x8] sm:$0xf]
    %v1558 = vld [vmem:[%s1554 + $0xc] sm:$0xf]
    %v1559 = vld [vmem:[%s1554 + $0x10] sm:$0xf]
    %v1560 = vld [vmem:[%s1554 + $0x14] sm:$0xf]
    %v1561 = vld [vmem:[%s1554 + $0x18] sm:$0xf]
    %v1562 = vld [vmem:[%s1554 + $0x1c] sm:$0xf]
    %v1563 = vlaneseq
    %v1564 = vshrl.u32 %v1563, 7
    %v1565 = vsub.s32 3, %v1564
    %v1566 = vrot.slane %v1358, %v1565
    %v1575 = vunpack.c.l.b16 %v1555
    %v1576 = vunpack.c.l.b16 %v1556
    %v1577 = vunpack.c.l.b16 %v1557
    %v1578 = vunpack.c.l.b16 %v1558
    %v1579 = vunpack.c.l.b16 %v1559
    %v1580 = vunpack.c.l.b16 %v1560
    %v1581 = vunpack.c.l.b16 %v1561
    %v1582 = vunpack.c.l.b16 %v1562
    %v1583 = vpack.c.b16 %v1576, %v1575
    %v1584 = vpack.c.b16 %v1578, %v1577
    %v1585 = vpack.c.b16 %v1580, %v1579
    %v1586 = vpack.c.b16 %v1582, %v1581
    %v1592 = vsel %vm424, %v1553, 0
    %1594 = vmatprep.subr.bf16.mxu0 0
    %1595 = vmatpush1.bf16.msra.mxu0 0
    %1596 = vmatprep.subr.bf16.mxu0 0
    %1597 = vmatpush1.bf16.msra.mxu0 0
    %1598 = vmatprep.subr.bf16.mxu0 0
    %1599 = vmatpush1.bf16.msra.mxu0 0
    %1600 = vmatprep.subr.bf16.mxu0 0
    %1601 = vmatpush1.bf16.msra.mxu0 0
    %1602 = vmatprep.subr.bf16.mxu0 0
    %1603 = vmatpush1.bf16.msra.mxu0 %v1586
    %1604 = vmatprep.subr.bf16.mxu0 0
    %1605 = vmatpush1.bf16.msra.mxu0 %v1585
    %1606 = vmatprep.subr.bf16.mxu0 0
    %1607 = vmatpush1.bf16.msra.mxu0 %v1584
    %1608 = vmatprep.subr.bf16.mxu0 0
    %1609 = vmatpush1.bf16.msra.mxu0 %v1583
    %1610 = vmatprep.subr.bf16.mxu0 0
    %1611 = vmatpush2.bf16.msra.mxu0 0
    %1612 = vmatprep.subr.bf16.mxu0 0
    %1613 = vmatpush2.bf16.msra.mxu0 0
    %1614 = vmatprep.subr.bf16.mxu0 0
    %1615 = vmatpush2.bf16.msra.mxu0 0
    %1616 = vmatprep.subr.bf16.mxu0 0
    %1617 = vmatpush2.bf16.msra.mxu0 0
    %1618 = vmatprep.subr.bf16.mxu0 0
    %1619 = vmatpush2.bf16.msra.mxu0 0
    %1620 = vmatprep.subr.bf16.mxu0 0
    %1621 = vmatpush2.bf16.msra.mxu0 0
    %1622 = vmatprep.subr.bf16.mxu0 0
    %1623 = vmatpush2.bf16.msra.mxu0 0
    %1624 = vmatprep.subr.bf16.mxu0 0
    %1625 = vmatpush2.bf16.msra.mxu0 0
    %1626 = vmatprep.mubr.bf16.mxu0 0
    %1627 = vmatmul.mubr.bf16.gmra.mxu0 %v1592
    %v1628 = vpop.f32.mrf.mxu0
    %v1629 = vadd.f32 %v1566, %v1628
    %v1630 = vpop.f32.mrf.mxu0
    %v1631 = vpop.f32.mrf.mxu0
    %v1632 = vadd.f32 %v1566, %v1631
    %v1633 = vpop.f32.mrf.mxu0
    %1634 = vdwg.mxu0
    %v1635 = vadd.f32 %v1463, %v1629
    %v1636 = vadd.f32 %v1464, %v1632
    %v1637 = vsel %vm167, %v1635, 0.0
    %1638 = vadd.xlane.f32.xlu0 %v1637
    %v1639 = vpop.xlane.xlu0 %1638
    %v1640 = vsel %vm167, %v1636, 0.0
    %1641 = vadd.xlane.f32.xlu0 %v1640
    %v1642 = vpop.xlane.xlu0 %1641
    %v1643 = vmul.f32 %v1639, %v174
    %v1644 = vmul.f32 %v1642, %v174
    %v1645 = vsub.f32 %v1635, %v1643
    %v1646 = vsub.f32 %v1636, %v1644
    %v1647 = vmul.f32 %v1645, %v1645
    %v1648 = vmul.f32 %v1646, %v1646
    %v1649 = vsel %vm167, %v1647, 0.0
    %1650 = vadd.xlane.f32.xlu0 %v1649
    %v1651 = vpop.xlane.xlu0 %1650
    %v1652 = vsel %vm167, %v1648, 0.0
    %1653 = vadd.xlane.f32.xlu0 %v1652
    %v1654 = vpop.xlane.xlu0 %1653
    %v1655 = vmul.f32 %v1651, %v174
    %v1656 = vmul.f32 %v1654, %v174
    %v1657 = vadd.f32 %v1655, 1e-12
    %v1658 = vadd.f32 %v1656, 1e-12
    %v1659 = vrsqrt.pop %v1657
    %v1660 = vrsqrt.pop %v1658
    %v1661 = vmul.f32 %v1645, %v1659
    %v1662 = vmul.f32 %v1646, %v1660
    %v1663 = vlaneseq
    %v1664 = vshrl.u32 %v1663, 7
    %v1665 = vsub.s32 4, %v1664
    %v1666 = vrot.slane %v1358, %v1665
    %v1667 = vmul.f32 %v1661, %v1666
    %v1668 = vmul.f32 %v1662, %v1666
    %v1669 = vlaneseq
    %v1670 = vshrl.u32 %v1669, 7
    %v1671 = vsub.s32 5, %v1670
    %v1672 = vrot.slane %v1358, %v1671
    %v1673 = vadd.f32 %v1667, %v1672
    %v1674 = vadd.f32 %v1668, %v1672
    %v1675 = vsel %vm167, %v1673, 0.0
    %v1676 = vrot.slane %v1675, 4
    %v1677 = vadd.f32 %v1675, %v1676
    %v1678 = vrot.slane %v1677, 2
    %v1679 = vadd.f32 %v1677, %v1678
    %v1680 = vrot.slane %v1679, 1
    %v1681 = vadd.f32 %v1679, %v1680
    %v1682 = vrcp.pop 8.0
    %v1683 = vmul.f32 %v1681, %v1682
    %v1684 = vsel %vm167, %v1674, 0.0
    %v1685 = vrot.slane %v1684, 4
    %v1686 = vadd.f32 %v1684, %v1685
    %v1687 = vrot.slane %v1686, 2
    %v1688 = vadd.f32 %v1686, %v1687
    %v1689 = vrot.slane %v1688, 1
    %v1690 = vadd.f32 %v1688, %v1689
    %v1691 = vmul.f32 %v1690, %v1682
    %vm1692 = vcmask 1040384
    %v1693 = vsel %vm1692, %v1683, %v1691
    %vm1694 = vcmask 254976
    %1695 = vst.msk [vmem:[#allocation2] sm:$0x3] %vm1694, %v1693
    // Predicated region
    $region54: #{text_embedding_forward.1} parent=1 // pred_check
      _
    $region55: #{text_embedding_forward.1} parent=1 // pred_check_branch
      %1697 = sbr.rel (0) target = $region57
    $region56: #{text_embedding_forward.1} parent=1 // pred_region
      %s1699 = ssub.s32 32, 32
      %1700 = vsyncadd [#allocation3], %s1699
      %s1702 = sshll.u32 [#allocation2], 4
      %s1703 = int_to_ptr.vmem [resolvable:$true] %s1702
      %1705 = dma.vmem_to_hbm [thread:$0]  %s1703, 32, %s13, [#allocation3]
    $region57: #{text_embedding_forward.1} parent=1 // pred_fallthru
      _
    // Predicated region
    $region58: #{text_embedding_forward.1} parent=1 // pred_check
      _
    $region59: #{text_embedding_forward.1} parent=1 // pred_check_branch
      %1707 = sbr.rel (0) target = $region61
    $region60: #{text_embedding_forward.1} parent=1 // pred_region
      %1708 = dma.done [#allocation3], 32
    $region61: #{text_embedding_forward.1} parent=1 // pred_fallthru
      _
    %1709 = vsyncpa [#allocation3], 1

</llo_original>
